<compile_context>
chip_gen: v6e
topology: v6e:2x2x1
jax: 0.10.0
libtpu: 0.0.40
codegen_flags: <defaults>
</compile_context>

<pallas_src>
from functools import lru_cache

import numpy as np
import jax
import jax.numpy as jnp
from jax import lax
from jax.experimental import pallas as pl
from jax.experimental.pallas import tpu as pltpu


# ----------------------------------------------------------------------------
# Host-side constant matrices (cached so repeated forward calls are free).
# ----------------------------------------------------------------------------
def _adaptive_avg_matrix(out_size: int, in_size: int) -> np.ndarray:
    """Row-stochastic matrix P (out, in) with P @ x == 1-D adaptive average
    pooling of x (== F.interpolate(..., mode='area'))."""
    P = np.zeros((out_size, in_size), dtype=np.float32)
    for i in range(out_size):
        start = (i * in_size) // out_size
        end = -((-(i + 1) * in_size) // out_size)  # ceil((i+1)*in/out)
        P[i, start:end] = 1.0 / float(end - start)
    return P


@lru_cache(maxsize=None)
def _row_pool_matrix(out_size: int, in_size: int):
    """(h, H) row-pooling matrix, cached on device."""
    return jnp.asarray(_adaptive_avg_matrix(out_size, in_size))


@lru_cache(maxsize=None)
def _col_pool_matrix_blockdiag(out_size: int, in_size: int, channels: int):
    """(C*w, C*W) block-diagonal column-pooling matrix (one pw block per
    channel), cached on device.  Lets the column pooling run as a single
    lane-dense contraction on the (h, C*W) slab with no in-kernel reshape."""
    pw = _adaptive_avg_matrix(out_size, in_size)
    return jnp.asarray(np.kron(np.eye(channels, dtype=np.float32), pw))


@lru_cache(maxsize=None)
def _channel_collapse_matrix(w: int, channels: int):
    """(C*w, w) selection matrix S with (d2 @ S)[h, j] = sum_c d2[h, c*w + j].
    Turns the channel-norm reduction into one MXU matmul instead of C
    unaligned lane slices."""
    return jnp.asarray(np.tile(np.eye(w, dtype=np.float32), (channels, 1)))


# ----------------------------------------------------------------------------
# Fused multiscale-EPE kernel builder (cached per shape signature).
# ----------------------------------------------------------------------------
@lru_cache(maxsize=None)
def _build_multiscale_call(B, C, H, W, scale_hw, weights, t_dtype, o_dtypes,
                           bf16_pool):
    """Returns (pallas_fn, const_arrays, active_scale_indices)."""
    del t_dtype, o_dtypes  # cast inside the kernel; kept only in the cache key

    # Static per-scale metadata.  Scales whose PyTorch crop slice is empty
    # (int(0.1*h) == 0 or int(0.1*w) == 0) contribute exactly 0 -> dropped.
    ph_idx, pw_idx, cs_idx = {}, {}, {}
    metas = []
    for i, (h, w) in enumerate(scale_hw):
        c0, c1 = int(0.1 * h), int(0.1 * w)
        if c0 == 0 or c1 == 0:
            continue
        ph_idx.setdefault((h, H), len(ph_idx))
        pw_idx.setdefault((w, W), len(pw_idx))
        cs_idx.setdefault(w, len(cs_idx))
        metas.append(dict(scale=i, h=h, w=w, c0=c0, c1=c1,
                          weight=float(weights[i]),
                          ph=ph_idx[(h, H)], pw=pw_idx[(w, W)], cs=cs_idx[w]))
    if not metas:
        return None, (), ()

    ph_arrays = tuple(_row_pool_matrix(h, inH) for (h, inH) in ph_idx)
    pw_arrays = tuple(_col_pool_matrix_blockdiag(w, inW, C)
                      for (w, inW) in pw_idx)
    cs_arrays = tuple(_channel_collapse_matrix(w, C) for w in cs_idx)
    n_ph, n_pw, n_cs = len(ph_arrays), len(pw_arrays), len(cs_arrays)
    n_act = len(metas)
    inv_b = 1.0 / float(B)
    # bf16 MXU inputs (f32 accumulation) are a v6e/v7x throughput win at large
    # resolutions; default off to keep exact f32 fidelity with the PyTorch op.
    mm_dtype = jnp.bfloat16 if bf16_pool else jnp.float32

    def kernel(*refs):
        t_ref = refs[0]
        ph_refs = refs[1:1 + n_ph]
        pw_refs = refs[1 + n_ph:1 + n_ph + n_pw]
        cs_refs = refs[1 + n_ph + n_pw:1 + n_ph + n_pw + n_cs]
        o_refs = refs[1 + n_ph + n_pw + n_cs:
                      1 + n_ph + n_pw + n_cs + n_act]
        res_ref = refs[-1]

        b = pl.program_id(0)

        @pl.when(b == 0)
        def _init():
            res_ref[...] = jnp.zeros_like(res_ref)

        t = t_ref[0].astype(mm_dtype)                      # (H, C*W) lane-dense

        pooled = {}   # (ph_idx, pw_idx) -> area-pooled target (h, C*w)
        masks = {}    # (h, w)           -> crop mask (h, w)
        partial_sum = jnp.float32(0.0)

        for k, m in enumerate(metas):
            h, w, c0, c1 = m["h"], m["w"], m["c0"], m["c1"]

            key = (m["ph"], m["pw"])
            if key not in pooled:
                ph = ph_refs[m["ph"]][...].astype(mm_dtype)        # (h, H)
                pwb = pw_refs[m["pw"]][...].astype(mm_dtype)       # (C*w, C*W)
                # row pool:  (h, H) @ (H, C*W) -> (h, C*W)
                y = jnp.dot(ph, t, preferred_element_type=jnp.float32)
                # col pool:  contract W against block-diag Pw -> (h, C*w)
                pooled[key] = lax.dot_general(
                    y.astype(mm_dtype), pwb,
                    dimension_numbers=(((1,), (1,)), ((), ())),
                    preferred_element_type=jnp.float32)
            ts = pooled[key]                                       # (h, C*w) f32

            if (h, w) not in masks:
                ri = lax.broadcasted_iota(jnp.int32, (h, w), 0)
                ci = lax.broadcasted_iota(jnp.int32, (h, w), 1)
                masks[(h, w)] = ((ri >= c0) & (ri < h - c0) &
                                 (ci >= c1) & (ci < w - c1))
            mask = masks[(h, w)]

            d = ts - o_refs[k][0].astype(jnp.float32)              # (h, C*w)
            d2 = d * d
            # channel-norm via MXU selection matmul: (h, C*w) @ (C*w, w)
            sq = jnp.dot(d2, cs_refs[m["cs"]][...],
                         preferred_element_type=jnp.float32)       # (h, w)
            epe = jnp.sqrt(sq)                                     # (h, w)

            partial_sum = partial_sum + jnp.float32(m["weight"]) * jnp.sum(
                jnp.where(mask, epe, jnp.float32(0.0)))

        # weighted per-batch contribution, accumulated across the batch grid.
        res_ref[...] = res_ref[...] + partial_sum * jnp.float32(inv_b)

    in_specs = [pl.BlockSpec((1, H, C * W), lambda b: (b, 0, 0))]
    for arr in ph_arrays + pw_arrays + cs_arrays:
        in_specs.append(pl.BlockSpec(arr.shape, lambda b: (0, 0)))
    for m in metas:
        in_specs.append(pl.BlockSpec((1, m["h"], C * m["w"]),
                                     lambda b: (b, 0, 0)))

    fn = pl.pallas_call(
        kernel,
        out_shape=jax.ShapeDtypeStruct((1, 1), jnp.float32),
        grid_spec=pltpu.PrefetchScalarGridSpec(
            num_scalar_prefetch=0,
            grid=(B,),
            in_specs=in_specs,
            out_specs=pl.BlockSpec((1, 1), lambda b: (0, 0))),
        compiler_params=pltpu.CompilerParams(
            # output scalar accumulates across the batch axis -> "arbitrary"
            dimension_semantics=("arbitrary",),
            vmem_limit_bytes=32 * 1024 * 1024),
    )
    const_arrays = ph_arrays + pw_arrays + cs_arrays
    active = tuple(m["scale"] for m in metas)
    return fn, const_arrays, active


# ----------------------------------------------------------------------------
# Public wrapper: MultiscaleLoss.forward (EPE, mean=False, sparse=False).
# ----------------------------------------------------------------------------
def multiscale_loss(outputs, target, weights=(0.005, 0.01, 0.02, 0.08, 0.32),
                    bf16_pool=False):
    if not isinstance(outputs, (tuple, list)):
        outputs = [outputs]
    outputs = list(outputs)
    weights = tuple(float(wgt) for wgt in weights)
    assert len(weights) == len(outputs), \
        "Number of scales must match number of weights"

    B, C, H, W = target.shape
    scale_hw = tuple((int(o.shape[2]), int(o.shape[3])) for o in outputs)
    o_dtypes = tuple(str(o.dtype) for o in outputs)

    fn, const_arrays, active = _build_multiscale_call(
        int(B), int(C), int(H), int(W), scale_hw, weights,
        str(target.dtype), o_dtypes, bool(bf16_pool))
    if fn is None:            # every scale's crop slice was empty -> loss == 0
        return jnp.float32(0.0)

    # Layout plumbing (lane-dense slabs): NCHW -> (B, H, C*W) / (B, h, C*w).
    t_flat = jnp.transpose(target, (0, 2, 1, 3)).reshape(B, H, C * W)
    o_flats = []
    for i in active:
        o = outputs[i]
        h, w = o.shape[2], o.shape[3]
        o_flats.append(jnp.transpose(o, (0, 2, 1, 3)).reshape(B, h, C * w))

    res = fn(t_flat, *const_arrays, *o_flats)
    return res[0, 0]


# ----------------------------------------------------------------------------
# Pure-JAX reference (no Pallas) for a sanity check.
# ----------------------------------------------------------------------------
def _ref_epe_one_scale(output, target):
    B, C, h, w = output.shape
    H, W = target.shape[2:]
    ph = jnp.asarray(_adaptive_avg_matrix(h, H))
    pw = jnp.asarray(_adaptive_avg_matrix(w, W))
    ts = jnp.einsum('hH,bcHW,wW->bchw', ph, target.astype(jnp.float32), pw)
    epe = jnp.sqrt(jnp.sum((ts - output.astype(jnp.float32)) ** 2, axis=1))
    c0, c1 = int(0.1 * h), int(0.1 * w)
    if c0 == 0 or c1 == 0:
        return jnp.float32(0.0)
    return jnp.sum(epe[:, c0:h - c0, c1:w - c1]) / B


def _ref_multiscale_loss(outputs, target, weights=(0.005, 0.01, 0.02, 0.08, 0.32)):
    loss = jnp.float32(0.0)
    for o, wgt in zip(outputs, weights):
        loss = loss + jnp.float32(wgt) * _ref_epe_one_scale(o, target)
    return loss


if __name__ == "__main__":
    key = jax.random.PRNGKey(0)
    B, C = 2, 2                      # flow tensors: 2 channels (u, v)
    H = W = 32                       # full-resolution target
    scales = [32, 16, 16, 16, 16]    # 5 intermediate output scales (one per weight)

    k_t, *k_outs = jax.random.split(key, 1 + len(scales))
    target = jax.random.normal(k_t, (B, C, H, W), dtype=jnp.float32)
    outputs = [
        jax.random.normal(k, (B, C, s, s), dtype=jnp.float32)
        for k, s in zip(k_outs, scales)
    ]

    loss_fn = jax.jit(multiscale_loss)
    loss = jax.block_until_ready(loss_fn(outputs, target))

    ref = jax.block_until_ready(_ref_multiscale_loss(outputs, target))
    if not np.allclose(np.asarray(loss), np.asarray(ref), rtol=1e-2, atol=1e-3):
        raise AssertionError(f"kernel loss {loss} != reference {ref}")

    print("KERNEL_OK")
</pallas_src>

<mosaic_0001>
module attributes {stable_mosaic.version = 11 : i64} {
  func.func @kernel(%arg0: i32, %arg1: memref<1x32x64xf32, #tpu.memory_space<vmem>>, %arg2: memref<32x32xf32, #tpu.memory_space<vmem>>, %arg3: memref<16x32xf32, #tpu.memory_space<vmem>>, %arg4: memref<64x64xf32, #tpu.memory_space<vmem>>, %arg5: memref<32x64xf32, #tpu.memory_space<vmem>>, %arg6: memref<64x32xf32, #tpu.memory_space<vmem>>, %arg7: memref<32x16xf32, #tpu.memory_space<vmem>>, %arg8: memref<1x32x64xf32, #tpu.memory_space<vmem>>, %arg9: memref<1x16x32xf32, #tpu.memory_space<vmem>>, %arg10: memref<1x16x32xf32, #tpu.memory_space<vmem>>, %arg11: memref<1x16x32xf32, #tpu.memory_space<vmem>>, %arg12: memref<1x16x32xf32, #tpu.memory_space<vmem>>, %arg13: memref<1x1xf32, #tpu.memory_space<vmem>>) attributes {dimension_semantics = [#tpu.dimension_semantics<arbitrary>], iteration_bounds = array<i64: 2>, scalar_prefetch = 0 : i64, scratch_operands = 0 : i64, tpu.core_type = #tpu.core_type<tc>, window_params = [{transform_indices = @transform_0, window_bounds = array<i64: 1, 32, 64>}, {pipeline_mode = #tpu.pipeline_mode<synchronous>, transform_indices = @transform_1, window_bounds = array<i64: 32, 32>}, {pipeline_mode = #tpu.pipeline_mode<synchronous>, transform_indices = @transform_2, window_bounds = array<i64: 16, 32>}, {pipeline_mode = #tpu.pipeline_mode<synchronous>, transform_indices = @transform_3, window_bounds = array<i64: 64, 64>}, {pipeline_mode = #tpu.pipeline_mode<synchronous>, transform_indices = @transform_4, window_bounds = array<i64: 32, 64>}, {pipeline_mode = #tpu.pipeline_mode<synchronous>, transform_indices = @transform_5, window_bounds = array<i64: 64, 32>}, {pipeline_mode = #tpu.pipeline_mode<synchronous>, transform_indices = @transform_6, window_bounds = array<i64: 32, 16>}, {transform_indices = @transform_7, window_bounds = array<i64: 1, 32, 64>}, {transform_indices = @transform_8, window_bounds = array<i64: 1, 16, 32>}, {transform_indices = @transform_9, window_bounds = array<i64: 1, 16, 32>}, {transform_indices = @transform_10, window_bounds = array<i64: 1, 16, 32>}, {transform_indices = @transform_11, window_bounds = array<i64: 1, 16, 32>}, {pipeline_mode = #tpu.pipeline_mode<synchronous>, transform_indices = @transform_12, window_bounds = array<i64: 1, 1>}]} {
    %c0_i32 = arith.constant 0 : i32
    %0 = arith.cmpi eq, %arg0, %c0_i32 : i32
    %1 = arith.extui %0 : i1 to i32
    %c0_i32_0 = arith.constant 0 : i32
    %2 = arith.cmpi ne, %1, %c0_i32_0 : i32
    scf.if %2 {
      %cst_69 = arith.constant 0.000000e+00 : f32
      %119 = vector.broadcast %cst_69 : f32 to vector<1x1xf32>
      %c0_70 = arith.constant 0 : index
      %c0_71 = arith.constant 0 : index
      %120 = vector.load %arg13[%c0_70, %c0_71] : memref<1x1xf32, #tpu.memory_space<vmem>>, vector<1x1xf32>
      tpu.vector_store %arg13[%c0_70, %c0_71], %119 {strides = array<i32>} : memref<1x1xf32, #tpu.memory_space<vmem>>, vector<1x1xf32>,
    } else {
    }
    %c0 = arith.constant 0 : index
    %c0_1 = arith.constant 0 : index
    %c0_2 = arith.constant 0 : index
    %3 = vector.load %arg1[%c0, %c0_1, %c0_2] : memref<1x32x64xf32, #tpu.memory_space<vmem>>, vector<1x32x64xf32>
    %4 = vector.shape_cast %3 : vector<1x32x64xf32> to vector<32x64xf32>
    %c0_3 = arith.constant 0 : index
    %c0_4 = arith.constant 0 : index
    %5 = vector.load %arg2[%c0_3, %c0_4] : memref<32x32xf32, #tpu.memory_space<vmem>>, vector<32x32xf32>
    %c0_5 = arith.constant 0 : index
    %c0_6 = arith.constant 0 : index
    %6 = vector.load %arg4[%c0_5, %c0_6] : memref<64x64xf32, #tpu.memory_space<vmem>>, vector<64x64xf32>
    %cst = arith.constant dense<0.000000e+00> : vector<32x64xf32>
    %7 = tpu.matmul %5, %4, %cst {dimension_numbers = #tpu.dot_dimension_numbers<[1], [0], [0], [1], [0, 0, 1, 1], [], []>} : vector<32x32xf32>, vector<32x64xf32>, vector<32x64xf32> -> vector<32x64xf32>
    %cst_7 = arith.constant dense<0.000000e+00> : vector<32x64xf32>
    %8 = tpu.matmul %7, %6, %cst_7 {dimension_numbers = #tpu.dot_dimension_numbers<[1], [1], [0], [0], [0, 0, 1, 0], [], []>} : vector<32x64xf32>, vector<64x64xf32>, vector<32x64xf32> -> vector<32x64xf32>
    %9 = tpu.iota {dimensions = array<i32: 0>} : vector<32x32xi32>
    %10 = tpu.iota {dimensions = array<i32: 1>} : vector<32x32xi32>
    %c3_i32 = arith.constant 3 : i32
    %11 = vector.broadcast %c3_i32 : i32 to vector<32x32xi32>
    %12 = arith.cmpi sge, %9, %11 : vector<32x32xi32>
    %c29_i32 = arith.constant 29 : i32
    %13 = vector.broadcast %c29_i32 : i32 to vector<32x32xi32>
    %14 = arith.cmpi slt, %9, %13 : vector<32x32xi32>
    %15 = arith.andi %12, %14 : vector<32x32xi1>
    %c3_i32_8 = arith.constant 3 : i32
    %16 = vector.broadcast %c3_i32_8 : i32 to vector<32x32xi32>
    %17 = arith.cmpi sge, %10, %16 : vector<32x32xi32>
    %18 = arith.andi %15, %17 : vector<32x32xi1>
    %c29_i32_9 = arith.constant 29 : i32
    %19 = vector.broadcast %c29_i32_9 : i32 to vector<32x32xi32>
    %20 = arith.cmpi slt, %10, %19 : vector<32x32xi32>
    %21 = arith.andi %18, %20 : vector<32x32xi1>
    %c0_10 = arith.constant 0 : index
    %c0_11 = arith.constant 0 : index
    %c0_12 = arith.constant 0 : index
    %22 = vector.load %arg8[%c0_10, %c0_11, %c0_12] : memref<1x32x64xf32, #tpu.memory_space<vmem>>, vector<1x32x64xf32>
    %23 = vector.shape_cast %22 : vector<1x32x64xf32> to vector<32x64xf32>
    %24 = arith.subf %8, %23 : vector<32x64xf32>
    %25 = arith.mulf %24, %24 : vector<32x64xf32>
    %c0_13 = arith.constant 0 : index
    %c0_14 = arith.constant 0 : index
    %26 = vector.load %arg6[%c0_13, %c0_14] : memref<64x32xf32, #tpu.memory_space<vmem>>, vector<64x32xf32>
    %cst_15 = arith.constant dense<0.000000e+00> : vector<32x32xf32>
    %27 = tpu.matmul %25, %26, %cst_15 {dimension_numbers = #tpu.dot_dimension_numbers<[1], [0], [0], [1], [0, 0, 1, 1], [], []>} : vector<32x64xf32>, vector<64x32xf32>, vector<32x32xf32> -> vector<32x32xf32>
    %28 = math.sqrt %27 : vector<32x32xf32>
    %cst_16 = arith.constant 0.000000e+00 : f32
    %29 = vector.broadcast %cst_16 : f32 to vector<32x32xf32>
    %30 = arith.select %21, %28, %29 : vector<32x32xi1>, vector<32x32xf32>
    %31 = vector.shape_cast %30 : vector<32x32xf32> to vector<1x32x32xf32>
    %cst_17 = arith.constant dense<0.000000e+00> : vector<1xf32>
    %32 = vector.multi_reduction <add>, %31, %cst_17 [1, 2] : vector<1x32x32xf32> to vector<1xf32>
    %33 = vector.shape_cast %32 : vector<1xf32> to vector<1x1x1xf32>
    %34 = vector.extract %33[0, 0, 0] : f32 from vector<1x1x1xf32>
    %cst_18 = arith.constant 5.000000e-03 : f32
    %35 = arith.mulf %cst_18, %34 : f32
    %cst_19 = arith.constant 0.000000e+00 : f32
    %36 = arith.addf %cst_19, %35 : f32
    %c0_20 = arith.constant 0 : index
    %c0_21 = arith.constant 0 : index
    %37 = vector.load %arg3[%c0_20, %c0_21] : memref<16x32xf32, #tpu.memory_space<vmem>>, vector<16x32xf32>
    %c0_22 = arith.constant 0 : index
    %c0_23 = arith.constant 0 : index
    %38 = vector.load %arg5[%c0_22, %c0_23] : memref<32x64xf32, #tpu.memory_space<vmem>>, vector<32x64xf32>
    %cst_24 = arith.constant dense<0.000000e+00> : vector<16x64xf32>
    %39 = tpu.matmul %37, %4, %cst_24 {dimension_numbers = #tpu.dot_dimension_numbers<[1], [0], [0], [1], [0, 0, 1, 1], [], []>} : vector<16x32xf32>, vector<32x64xf32>, vector<16x64xf32> -> vector<16x64xf32>
    %cst_25 = arith.constant dense<0.000000e+00> : vector<16x32xf32>
    %40 = tpu.matmul %39, %38, %cst_25 {dimension_numbers = #tpu.dot_dimension_numbers<[1], [1], [0], [0], [0, 0, 1, 0], [], []>} : vector<16x64xf32>, vector<32x64xf32>, vector<16x32xf32> -> vector<16x32xf32>
    %41 = tpu.iota {dimensions = array<i32: 0>} : vector<16x16xi32>
    %42 = tpu.iota {dimensions = array<i32: 1>} : vector<16x16xi32>
    %c1_i32 = arith.constant 1 : i32
    %43 = vector.broadcast %c1_i32 : i32 to vector<16x16xi32>
    %44 = arith.cmpi sge, %41, %43 : vector<16x16xi32>
    %c15_i32 = arith.constant 15 : i32
    %45 = vector.broadcast %c15_i32 : i32 to vector<16x16xi32>
    %46 = arith.cmpi slt, %41, %45 : vector<16x16xi32>
    %47 = arith.andi %44, %46 : vector<16x16xi1>
    %c1_i32_26 = arith.constant 1 : i32
    %48 = vector.broadcast %c1_i32_26 : i32 to vector<16x16xi32>
    %49 = arith.cmpi sge, %42, %48 : vector<16x16xi32>
    %50 = arith.andi %47, %49 : vector<16x16xi1>
    %c15_i32_27 = arith.constant 15 : i32
    %51 = vector.broadcast %c15_i32_27 : i32 to vector<16x16xi32>
    %52 = arith.cmpi slt, %42, %51 : vector<16x16xi32>
    %53 = arith.andi %50, %52 : vector<16x16xi1>
    %c0_28 = arith.constant 0 : index
    %c0_29 = arith.constant 0 : index
    %c0_30 = arith.constant 0 : index
    %54 = vector.load %arg9[%c0_28, %c0_29, %c0_30] : memref<1x16x32xf32, #tpu.memory_space<vmem>>, vector<1x16x32xf32>
    %55 = vector.shape_cast %54 : vector<1x16x32xf32> to vector<16x32xf32>
    %56 = arith.subf %40, %55 : vector<16x32xf32>
    %57 = arith.mulf %56, %56 : vector<16x32xf32>
    %c0_31 = arith.constant 0 : index
    %c0_32 = arith.constant 0 : index
    %58 = vector.load %arg7[%c0_31, %c0_32] : memref<32x16xf32, #tpu.memory_space<vmem>>, vector<32x16xf32>
    %cst_33 = arith.constant dense<0.000000e+00> : vector<16x16xf32>
    %59 = tpu.matmul %57, %58, %cst_33 {dimension_numbers = #tpu.dot_dimension_numbers<[1], [0], [0], [1], [0, 0, 1, 1], [], []>} : vector<16x32xf32>, vector<32x16xf32>, vector<16x16xf32> -> vector<16x16xf32>
    %60 = math.sqrt %59 : vector<16x16xf32>
    %cst_34 = arith.constant 0.000000e+00 : f32
    %61 = vector.broadcast %cst_34 : f32 to vector<16x16xf32>
    %62 = arith.select %53, %60, %61 : vector<16x16xi1>, vector<16x16xf32>
    %63 = vector.shape_cast %62 : vector<16x16xf32> to vector<1x16x16xf32>
    %cst_35 = arith.constant dense<0.000000e+00> : vector<1xf32>
    %64 = vector.multi_reduction <add>, %63, %cst_35 [1, 2] : vector<1x16x16xf32> to vector<1xf32>
    %65 = vector.shape_cast %64 : vector<1xf32> to vector<1x1x1xf32>
    %66 = vector.extract %65[0, 0, 0] : f32 from vector<1x1x1xf32>
    %cst_36 = arith.constant 0.00999999977 : f32
    %67 = arith.mulf %cst_36, %66 : f32
    %68 = arith.addf %36, %67 : f32
    %c0_37 = arith.constant 0 : index
    %c0_38 = arith.constant 0 : index
    %c0_39 = arith.constant 0 : index
    %69 = vector.load %arg10[%c0_37, %c0_38, %c0_39] : memref<1x16x32xf32, #tpu.memory_space<vmem>>, vector<1x16x32xf32>
    %70 = vector.shape_cast %69 : vector<1x16x32xf32> to vector<16x32xf32>
    %71 = arith.subf %40, %70 : vector<16x32xf32>
    %72 = arith.mulf %71, %71 : vector<16x32xf32>
    %c0_40 = arith.constant 0 : index
    %c0_41 = arith.constant 0 : index
    %73 = vector.load %arg7[%c0_40, %c0_41] : memref<32x16xf32, #tpu.memory_space<vmem>>, vector<32x16xf32>
    %cst_42 = arith.constant dense<0.000000e+00> : vector<16x16xf32>
    %74 = tpu.matmul %72, %73, %cst_42 {dimension_numbers = #tpu.dot_dimension_numbers<[1], [0], [0], [1], [0, 0, 1, 1], [], []>} : vector<16x32xf32>, vector<32x16xf32>, vector<16x16xf32> -> vector<16x16xf32>
    %75 = math.sqrt %74 : vector<16x16xf32>
    %cst_43 = arith.constant 0.000000e+00 : f32
    %76 = vector.broadcast %cst_43 : f32 to vector<16x16xf32>
    %77 = arith.select %53, %75, %76 : vector<16x16xi1>, vector<16x16xf32>
    %78 = vector.shape_cast %77 : vector<16x16xf32> to vector<1x16x16xf32>
    %cst_44 = arith.constant dense<0.000000e+00> : vector<1xf32>
    %79 = vector.multi_reduction <add>, %78, %cst_44 [1, 2] : vector<1x16x16xf32> to vector<1xf32>
    %80 = vector.shape_cast %79 : vector<1xf32> to vector<1x1x1xf32>
    %81 = vector.extract %80[0, 0, 0] : f32 from vector<1x1x1xf32>
    %cst_45 = arith.constant 2.000000e-02 : f32
    %82 = arith.mulf %cst_45, %81 : f32
    %83 = arith.addf %68, %82 : f32
    %c0_46 = arith.constant 0 : index
    %c0_47 = arith.constant 0 : index
    %c0_48 = arith.constant 0 : index
    %84 = vector.load %arg11[%c0_46, %c0_47, %c0_48] : memref<1x16x32xf32, #tpu.memory_space<vmem>>, vector<1x16x32xf32>
    %85 = vector.shape_cast %84 : vector<1x16x32xf32> to vector<16x32xf32>
    %86 = arith.subf %40, %85 : vector<16x32xf32>
    %87 = arith.mulf %86, %86 : vector<16x32xf32>
    %c0_49 = arith.constant 0 : index
    %c0_50 = arith.constant 0 : index
    %88 = vector.load %arg7[%c0_49, %c0_50] : memref<32x16xf32, #tpu.memory_space<vmem>>, vector<32x16xf32>
    %cst_51 = arith.constant dense<0.000000e+00> : vector<16x16xf32>
    %89 = tpu.matmul %87, %88, %cst_51 {dimension_numbers = #tpu.dot_dimension_numbers<[1], [0], [0], [1], [0, 0, 1, 1], [], []>} : vector<16x32xf32>, vector<32x16xf32>, vector<16x16xf32> -> vector<16x16xf32>
    %90 = math.sqrt %89 : vector<16x16xf32>
    %cst_52 = arith.constant 0.000000e+00 : f32
    %91 = vector.broadcast %cst_52 : f32 to vector<16x16xf32>
    %92 = arith.select %53, %90, %91 : vector<16x16xi1>, vector<16x16xf32>
    %93 = vector.shape_cast %92 : vector<16x16xf32> to vector<1x16x16xf32>
    %cst_53 = arith.constant dense<0.000000e+00> : vector<1xf32>
    %94 = vector.multi_reduction <add>, %93, %cst_53 [1, 2] : vector<1x16x16xf32> to vector<1xf32>
    %95 = vector.shape_cast %94 : vector<1xf32> to vector<1x1x1xf32>
    %96 = vector.extract %95[0, 0, 0] : f32 from vector<1x1x1xf32>
    %cst_54 = arith.constant 8.000000e-02 : f32
    %97 = arith.mulf %cst_54, %96 : f32
    %98 = arith.addf %83, %97 : f32
    %c0_55 = arith.constant 0 : index
    %c0_56 = arith.constant 0 : index
    %c0_57 = arith.constant 0 : index
    %99 = vector.load %arg12[%c0_55, %c0_56, %c0_57] : memref<1x16x32xf32, #tpu.memory_space<vmem>>, vector<1x16x32xf32>
    %100 = vector.shape_cast %99 : vector<1x16x32xf32> to vector<16x32xf32>
    %101 = arith.subf %40, %100 : vector<16x32xf32>
    %102 = arith.mulf %101, %101 : vector<16x32xf32>
    %c0_58 = arith.constant 0 : index
    %c0_59 = arith.constant 0 : index
    %103 = vector.load %arg7[%c0_58, %c0_59] : memref<32x16xf32, #tpu.memory_space<vmem>>, vector<32x16xf32>
    %cst_60 = arith.constant dense<0.000000e+00> : vector<16x16xf32>
    %104 = tpu.matmul %102, %103, %cst_60 {dimension_numbers = #tpu.dot_dimension_numbers<[1], [0], [0], [1], [0, 0, 1, 1], [], []>} : vector<16x32xf32>, vector<32x16xf32>, vector<16x16xf32> -> vector<16x16xf32>
    %105 = math.sqrt %104 : vector<16x16xf32>
    %cst_61 = arith.constant 0.000000e+00 : f32
    %106 = vector.broadcast %cst_61 : f32 to vector<16x16xf32>
    %107 = arith.select %53, %105, %106 : vector<16x16xi1>, vector<16x16xf32>
    %108 = vector.shape_cast %107 : vector<16x16xf32> to vector<1x16x16xf32>
    %cst_62 = arith.constant dense<0.000000e+00> : vector<1xf32>
    %109 = vector.multi_reduction <add>, %108, %cst_62 [1, 2] : vector<1x16x16xf32> to vector<1xf32>
    %110 = vector.shape_cast %109 : vector<1xf32> to vector<1x1x1xf32>
    %111 = vector.extract %110[0, 0, 0] : f32 from vector<1x1x1xf32>
    %cst_63 = arith.constant 3.200000e-01 : f32
    %112 = arith.mulf %cst_63, %111 : f32
    %113 = arith.addf %98, %112 : f32
    %c0_64 = arith.constant 0 : index
    %c0_65 = arith.constant 0 : index
    %114 = vector.load %arg13[%c0_64, %c0_65] : memref<1x1xf32, #tpu.memory_space<vmem>>, vector<1x1xf32>
    %cst_66 = arith.constant 5.000000e-01 : f32
    %115 = arith.mulf %113, %cst_66 : f32
    %116 = vector.broadcast %115 : f32 to vector<1x1xf32>
    %117 = arith.addf %114, %116 : vector<1x1xf32>
    %c0_67 = arith.constant 0 : index
    %c0_68 = arith.constant 0 : index
    %118 = vector.load %arg13[%c0_67, %c0_68] : memref<1x1xf32, #tpu.memory_space<vmem>>, vector<1x1xf32>
    tpu.vector_store %arg13[%c0_67, %c0_68], %117 {strides = array<i32>} : memref<1x1xf32, #tpu.memory_space<vmem>>, vector<1x1xf32>,
    return
  }
  func.func @transform_0(%arg0: i32) -> (i32, i32, i32) {
    %c0_i32 = arith.constant 0 : i32
    %c0_i32_0 = arith.constant 0 : i32
    %c0_i32_1 = arith.constant 0 : i32
    return %arg0, %c0_i32, %c0_i32_0 : i32, i32, i32
  }
  func.func @transform_1(%arg0: i32) -> (i32, i32) {
    %c0_i32 = arith.constant 0 : i32
    %c0_i32_0 = arith.constant 0 : i32
    %c0_i32_1 = arith.constant 0 : i32
    return %c0_i32, %c0_i32_0 : i32, i32
  }
  func.func @transform_2(%arg0: i32) -> (i32, i32) {
    %c0_i32 = arith.constant 0 : i32
    %c0_i32_0 = arith.constant 0 : i32
    %c0_i32_1 = arith.constant 0 : i32
    return %c0_i32, %c0_i32_0 : i32, i32
  }
  func.func @transform_3(%arg0: i32) -> (i32, i32) {
    %c0_i32 = arith.constant 0 : i32
    %c0_i32_0 = arith.constant 0 : i32
    %c0_i32_1 = arith.constant 0 : i32
    return %c0_i32, %c0_i32_0 : i32, i32
  }
  func.func @transform_4(%arg0: i32) -> (i32, i32) {
    %c0_i32 = arith.constant 0 : i32
    %c0_i32_0 = arith.constant 0 : i32
    %c0_i32_1 = arith.constant 0 : i32
    return %c0_i32, %c0_i32_0 : i32, i32
  }
  func.func @transform_5(%arg0: i32) -> (i32, i32) {
    %c0_i32 = arith.constant 0 : i32
    %c0_i32_0 = arith.constant 0 : i32
    %c0_i32_1 = arith.constant 0 : i32
    return %c0_i32, %c0_i32_0 : i32, i32
  }
  func.func @transform_6(%arg0: i32) -> (i32, i32) {
    %c0_i32 = arith.constant 0 : i32
    %c0_i32_0 = arith.constant 0 : i32
    %c0_i32_1 = arith.constant 0 : i32
    return %c0_i32, %c0_i32_0 : i32, i32
  }
  func.func @transform_7(%arg0: i32) -> (i32, i32, i32) {
    %c0_i32 = arith.constant 0 : i32
    %c0_i32_0 = arith.constant 0 : i32
    %c0_i32_1 = arith.constant 0 : i32
    return %arg0, %c0_i32, %c0_i32_0 : i32, i32, i32
  }
  func.func @transform_8(%arg0: i32) -> (i32, i32, i32) {
    %c0_i32 = arith.constant 0 : i32
    %c0_i32_0 = arith.constant 0 : i32
    %c0_i32_1 = arith.constant 0 : i32
    return %arg0, %c0_i32, %c0_i32_0 : i32, i32, i32
  }
  func.func @transform_9(%arg0: i32) -> (i32, i32, i32) {
    %c0_i32 = arith.constant 0 : i32
    %c0_i32_0 = arith.constant 0 : i32
    %c0_i32_1 = arith.constant 0 : i32
    return %arg0, %c0_i32, %c0_i32_0 : i32, i32, i32
  }
  func.func @transform_10(%arg0: i32) -> (i32, i32, i32) {
    %c0_i32 = arith.constant 0 : i32
    %c0_i32_0 = arith.constant 0 : i32
    %c0_i32_1 = arith.constant 0 : i32
    return %arg0, %c0_i32, %c0_i32_0 : i32, i32, i32
  }
  func.func @transform_11(%arg0: i32) -> (i32, i32, i32) {
    %c0_i32 = arith.constant 0 : i32
    %c0_i32_0 = arith.constant 0 : i32
    %c0_i32_1 = arith.constant 0 : i32
    return %arg0, %c0_i32, %c0_i32_0 : i32, i32, i32
  }
  func.func @transform_12(%arg0: i32) -> (i32, i32) {
    %c0_i32 = arith.constant 0 : i32
    %c0_i32_0 = arith.constant 0 : i32
    %c0_i32_1 = arith.constant 0 : i32
    return %c0_i32, %c0_i32_0 : i32, i32
  }
}

</mosaic_0001>

<llo_original>
// kernel: multiscale_loss.1
$region0: #{multiscale_loss.1}
  #allocation0 [shape = 'u32[]', space=smem, size = 0x4, offset = 0x4, fixed_abs, tag = 'smem constant byte address 0x4 - core index']
  #allocation1 [shape = 'u32[144,128]{1,0:T(1,128)}', space=vmem, size = 0x12000, scoped, tag = 'internal scratch']
  %s0 = inlined_call_operand.vmem [shape: f32[2,32,64], index: 0, kind: input, shape index: {}]
  %s1 = inlined_call_operand.vmem [shape: f32[32,32], index: 1, kind: input, shape index: {}]
  %s2 = inlined_call_operand.vmem [shape: f32[16,32], index: 2, kind: input, shape index: {}]
  %s3 = inlined_call_operand.vmem [shape: f32[64,64], index: 3, kind: input, shape index: {}]
  %s4 = inlined_call_operand.vmem [shape: f32[32,64], index: 4, kind: input, shape index: {}]
  %s5 = inlined_call_operand.vmem [shape: f32[64,32], index: 5, kind: input, shape index: {}]
  %s6 = inlined_call_operand.vmem [shape: f32[32,16], index: 6, kind: input, shape index: {}]
  %s7 = inlined_call_operand.vmem [shape: f32[2,32,64], index: 7, kind: input, shape index: {}]
  %s8 = inlined_call_operand.vmem [shape: f32[2,16,32], index: 8, kind: input, shape index: {}]
  %s9 = inlined_call_operand.vmem [shape: f32[2,16,32], index: 9, kind: input, shape index: {}]
  %s10 = inlined_call_operand.vmem [shape: f32[2,16,32], index: 10, kind: input, shape index: {}]
  %s11 = inlined_call_operand.vmem [shape: f32[2,16,32], index: 11, kind: input, shape index: {}]
  %s12 = inlined_call_operand.hbm [shape: f32[1,1], index: 12, kind: output, shape index: {}]
  %s13 = sld [smem:[#allocation0]]
  $region85: #{multiscale_loss.1} parent=0
    _
  %s15 = ssub.s32 1, %s13
  %s16 = scalar_select 0, %s15, %s13
  $region1: #{multiscale_loss.1} parent=0
    #allocation2 [shape = 'u8[512]{0}', space=vmem, size = 0x400, scoped, tag = 'output window, operand 0, single buffered']
    #allocation3 [shape = 's32[2]{0}', space=sflag, size = 0x8, scoped, tag = 'scoped memory for multiscale_loss.1']
    %17 = vsyncpa [#allocation3], 0
    loop: start=0, step=1, limit=4
    $region2: #{multiscale_loss.1} parent=1 // loop_pre_header
      _
    $region3: #{multiscale_loss.1} parent=1 // loop_header
      %s19 = sphi 0, %s23
      %p20 = scmp.ge.s32.totalorder %s19, 4
      %s29 = sphi 0, %s31
      %s32 = sphi 0, %s29
      %s33 = sphi 0, %s32
      %s49 = sphi 0, %s33
      %s53 = sphi 0, %s53
      %s55 = sphi 0, %s53
      %s56 = sphi 0, %s55
      %s70 = sphi 0, %s56
      %s74 = sphi 0, %s74
      %s76 = sphi 0, %s74
      %s77 = sphi 0, %s76
      %s91 = sphi 0, %s77
      %s95 = sphi 0, %s95
      %s97 = sphi 0, %s95
      %s98 = sphi 0, %s97
      %s112 = sphi 0, %s98
      %s116 = sphi 0, %s116
      %s118 = sphi 0, %s116
      %s119 = sphi 0, %s118
      %s133 = sphi 0, %s119
      %s137 = sphi 0, %s137
      %s139 = sphi 0, %s137
      %s140 = sphi 0, %s139
      %s154 = sphi 0, %s140
      %s158 = sphi 0, %s158
      %s160 = sphi 0, %s158
      %s161 = sphi 0, %s160
      %s175 = sphi 0, %s161
      %s181 = sphi 0, %s183
      %s184 = sphi 0, %s181
      %s185 = sphi 0, %s184
      %s201 = sphi 0, %s185
      %s207 = sphi 0, %s209
      %s210 = sphi 0, %s207
      %s211 = sphi 0, %s210
      %s227 = sphi 0, %s211
      %s233 = sphi 0, %s235
      %s236 = sphi 0, %s233
      %s237 = sphi 0, %s236
      %s253 = sphi 0, %s237
      %s259 = sphi 0, %s261
      %s262 = sphi 0, %s259
      %s263 = sphi 0, %s262
      %s279 = sphi 0, %s263
      %s285 = sphi 0, %s287
      %s288 = sphi 0, %s285
      %s289 = sphi 0, %s288
      %s305 = sphi 0, %s289
      %s309 = sphi 0, %s309
      %s311 = sphi 0, %s309
      %s312 = sphi 0, %s311
      %s326 = sphi 0, %s312
    $region4: #{multiscale_loss.1} parent=1 // loop_header_branch
      %22 = sbr.rel (%p20) target = $region8
    $region5: #{multiscale_loss.1} parent=1 // loop_body
      %s24 = ssub.s32 %s19, 1
      %s25 = ssub.s32 %s19, 2
      %s26 = sadd.s32 %s19, 1
      %s27 = ssub.s32 %s19, %s26
      %p28 = scmp.eq.s32.totalorder %s27, 0
      %s30 = sadd.s32 %s29, 1
      %s31 = scalar_select %p28, %s29, %s30
      %p34 = pneg %p28
      %p35 = scmp.eq.s32.totalorder %s19, 1
      %p36 = por %p34, %p35
      %p37 = scmp.ne.s32.totalorder %s29, %s32
      %p38 = scmp.eq.s32.totalorder %s19, 0
      %p39 = por %p37, %p38
      %p40 = scmp.ne.s32.totalorder %s29, %s32
      %p41 = scmp.eq.s32.totalorder %s24, 1
      %p42 = por %p40, %p41
      %p43 = scmp.ne.s32.totalorder %s32, %s33
      %p44 = scmp.eq.s32.totalorder %s24, 0
      %p45 = por %p43, %p44
      %p46 = scmp.ne.s32.totalorder %s32, %s33
      %p47 = scmp.eq.s32.totalorder %s25, 1
      %p48 = por %p46, %p47
      %p50 = scmp.ne.s32.totalorder %s33, %s49
      %p51 = scmp.eq.s32.totalorder %s25, 0
      %p52 = por %p50, %p51
      %s54 = sadd.s32 %s53, 1
      %p57 = scmp.eq.s32.totalorder %s19, 1
      %p58 = scmp.ne.s32.totalorder %s53, %s55
      %p59 = scmp.eq.s32.totalorder %s19, 0
      %p60 = por %p58, %p59
      %p61 = scmp.ne.s32.totalorder %s53, %s55
      %p62 = scmp.eq.s32.totalorder %s24, 1
      %p63 = por %p61, %p62
      %p64 = scmp.ne.s32.totalorder %s55, %s56
      %p65 = scmp.eq.s32.totalorder %s24, 0
      %p66 = por %p64, %p65
      %p67 = scmp.ne.s32.totalorder %s55, %s56
      %p68 = scmp.eq.s32.totalorder %s25, 1
      %p69 = por %p67, %p68
      %p71 = scmp.ne.s32.totalorder %s56, %s70
      %p72 = scmp.eq.s32.totalorder %s25, 0
      %p73 = por %p71, %p72
      %s75 = sadd.s32 %s74, 1
      %p78 = scmp.eq.s32.totalorder %s19, 1
      %p79 = scmp.ne.s32.totalorder %s74, %s76
      %p80 = scmp.eq.s32.totalorder %s19, 0
      %p81 = por %p79, %p80
      %p82 = scmp.ne.s32.totalorder %s74, %s76
      %p83 = scmp.eq.s32.totalorder %s24, 1
      %p84 = por %p82, %p83
      %p85 = scmp.ne.s32.totalorder %s76, %s77
      %p86 = scmp.eq.s32.totalorder %s24, 0
      %p87 = por %p85, %p86
      %p88 = scmp.ne.s32.totalorder %s76, %s77
      %p89 = scmp.eq.s32.totalorder %s25, 1
      %p90 = por %p88, %p89
      %p92 = scmp.ne.s32.totalorder %s77, %s91
      %p93 = scmp.eq.s32.totalorder %s25, 0
      %p94 = por %p92, %p93
      %s96 = sadd.s32 %s95, 1
      %p99 = scmp.eq.s32.totalorder %s19, 1
      %p100 = scmp.ne.s32.totalorder %s95, %s97
      %p101 = scmp.eq.s32.totalorder %s19, 0
      %p102 = por %p100, %p101
      %p103 = scmp.ne.s32.totalorder %s95, %s97
      %p104 = scmp.eq.s32.totalorder %s24, 1
      %p105 = por %p103, %p104
      %p106 = scmp.ne.s32.totalorder %s97, %s98
      %p107 = scmp.eq.s32.totalorder %s24, 0
      %p108 = por %p106, %p107
      %p109 = scmp.ne.s32.totalorder %s97, %s98
      %p110 = scmp.eq.s32.totalorder %s25, 1
      %p111 = por %p109, %p110
      %p113 = scmp.ne.s32.totalorder %s98, %s112
      %p114 = scmp.eq.s32.totalorder %s25, 0
      %p115 = por %p113, %p114
      %s117 = sadd.s32 %s116, 1
      %p120 = scmp.eq.s32.totalorder %s19, 1
      %p121 = scmp.ne.s32.totalorder %s116, %s118
      %p122 = scmp.eq.s32.totalorder %s19, 0
      %p123 = por %p121, %p122
      %p124 = scmp.ne.s32.totalorder %s116, %s118
      %p125 = scmp.eq.s32.totalorder %s24, 1
      %p126 = por %p124, %p125
      %p127 = scmp.ne.s32.totalorder %s118, %s119
      %p128 = scmp.eq.s32.totalorder %s24, 0
      %p129 = por %p127, %p128
      %p130 = scmp.ne.s32.totalorder %s118, %s119
      %p131 = scmp.eq.s32.totalorder %s25, 1
      %p132 = por %p130, %p131
      %p134 = scmp.ne.s32.totalorder %s119, %s133
      %p135 = scmp.eq.s32.totalorder %s25, 0
      %p136 = por %p134, %p135
      %s138 = sadd.s32 %s137, 1
      %p141 = scmp.eq.s32.totalorder %s19, 1
      %p142 = scmp.ne.s32.totalorder %s137, %s139
      %p143 = scmp.eq.s32.totalorder %s19, 0
      %p144 = por %p142, %p143
      %p145 = scmp.ne.s32.totalorder %s137, %s139
      %p146 = scmp.eq.s32.totalorder %s24, 1
      %p147 = por %p145, %p146
      %p148 = scmp.ne.s32.totalorder %s139, %s140
      %p149 = scmp.eq.s32.totalorder %s24, 0
      %p150 = por %p148, %p149
      %p151 = scmp.ne.s32.totalorder %s139, %s140
      %p152 = scmp.eq.s32.totalorder %s25, 1
      %p153 = por %p151, %p152
      %p155 = scmp.ne.s32.totalorder %s140, %s154
      %p156 = scmp.eq.s32.totalorder %s25, 0
      %p157 = por %p155, %p156
      %s159 = sadd.s32 %s158, 1
      %p162 = scmp.eq.s32.totalorder %s19, 1
      %p163 = scmp.ne.s32.totalorder %s158, %s160
      %p164 = scmp.eq.s32.totalorder %s19, 0
      %p165 = por %p163, %p164
      %p166 = scmp.ne.s32.totalorder %s158, %s160
      %p167 = scmp.eq.s32.totalorder %s24, 1
      %p168 = por %p166, %p167
      %p169 = scmp.ne.s32.totalorder %s160, %s161
      %p170 = scmp.eq.s32.totalorder %s24, 0
      %p171 = por %p169, %p170
      %p172 = scmp.ne.s32.totalorder %s160, %s161
      %p173 = scmp.eq.s32.totalorder %s25, 1
      %p174 = por %p172, %p173
      %p176 = scmp.ne.s32.totalorder %s161, %s175
      %p177 = scmp.eq.s32.totalorder %s25, 0
      %p178 = por %p176, %p177
      %s179 = ssub.s32 %s19, %s26
      %p180 = scmp.eq.s32.totalorder %s179, 0
      %s182 = sadd.s32 %s181, 1
      %s183 = scalar_select %p180, %s181, %s182
      %p186 = pneg %p180
      %p187 = scmp.eq.s32.totalorder %s19, 1
      %p188 = por %p186, %p187
      %p189 = scmp.ne.s32.totalorder %s181, %s184
      %p190 = scmp.eq.s32.totalorder %s19, 0
      %p191 = por %p189, %p190
      %p192 = scmp.ne.s32.totalorder %s181, %s184
      %p193 = scmp.eq.s32.totalorder %s24, 1
      %p194 = por %p192, %p193
      %p195 = scmp.ne.s32.totalorder %s184, %s185
      %p196 = scmp.eq.s32.totalorder %s24, 0
      %p197 = por %p195, %p196
      %p198 = scmp.ne.s32.totalorder %s184, %s185
      %p199 = scmp.eq.s32.totalorder %s25, 1
      %p200 = por %p198, %p199
      %p202 = scmp.ne.s32.totalorder %s185, %s201
      %p203 = scmp.eq.s32.totalorder %s25, 0
      %p204 = por %p202, %p203
      %s205 = ssub.s32 %s19, %s26
      %p206 = scmp.eq.s32.totalorder %s205, 0
      %s208 = sadd.s32 %s207, 1
      %s209 = scalar_select %p206, %s207, %s208
      %p212 = pneg %p206
      %p213 = scmp.eq.s32.totalorder %s19, 1
      %p214 = por %p212, %p213
      %p215 = scmp.ne.s32.totalorder %s207, %s210
      %p216 = scmp.eq.s32.totalorder %s19, 0
      %p217 = por %p215, %p216
      %p218 = scmp.ne.s32.totalorder %s207, %s210
      %p219 = scmp.eq.s32.totalorder %s24, 1
      %p220 = por %p218, %p219
      %p221 = scmp.ne.s32.totalorder %s210, %s211
      %p222 = scmp.eq.s32.totalorder %s24, 0
      %p223 = por %p221, %p222
      %p224 = scmp.ne.s32.totalorder %s210, %s211
      %p225 = scmp.eq.s32.totalorder %s25, 1
      %p226 = por %p224, %p225
      %p228 = scmp.ne.s32.totalorder %s211, %s227
      %p229 = scmp.eq.s32.totalorder %s25, 0
      %p230 = por %p228, %p229
      %s231 = ssub.s32 %s19, %s26
      %p232 = scmp.eq.s32.totalorder %s231, 0
      %s234 = sadd.s32 %s233, 1
      %s235 = scalar_select %p232, %s233, %s234
      %p238 = pneg %p232
      %p239 = scmp.eq.s32.totalorder %s19, 1
      %p240 = por %p238, %p239
      %p241 = scmp.ne.s32.totalorder %s233, %s236
      %p242 = scmp.eq.s32.totalorder %s19, 0
      %p243 = por %p241, %p242
      %p244 = scmp.ne.s32.totalorder %s233, %s236
      %p245 = scmp.eq.s32.totalorder %s24, 1
      %p246 = por %p244, %p245
      %p247 = scmp.ne.s32.totalorder %s236, %s237
      %p248 = scmp.eq.s32.totalorder %s24, 0
      %p249 = por %p247, %p248
      %p250 = scmp.ne.s32.totalorder %s236, %s237
      %p251 = scmp.eq.s32.totalorder %s25, 1
      %p252 = por %p250, %p251
      %p254 = scmp.ne.s32.totalorder %s237, %s253
      %p255 = scmp.eq.s32.totalorder %s25, 0
      %p256 = por %p254, %p255
      %s257 = ssub.s32 %s19, %s26
      %p258 = scmp.eq.s32.totalorder %s257, 0
      %s260 = sadd.s32 %s259, 1
      %s261 = scalar_select %p258, %s259, %s260
      %p264 = pneg %p258
      %p265 = scmp.eq.s32.totalorder %s19, 1
      %p266 = por %p264, %p265
      %p267 = scmp.ne.s32.totalorder %s259, %s262
      %p268 = scmp.eq.s32.totalorder %s19, 0
      %p269 = por %p267, %p268
      %p270 = scmp.ne.s32.totalorder %s259, %s262
      %p271 = scmp.eq.s32.totalorder %s24, 1
      %p272 = por %p270, %p271
      %p273 = scmp.ne.s32.totalorder %s262, %s263
      %p274 = scmp.eq.s32.totalorder %s24, 0
      %p275 = por %p273, %p274
      %p276 = scmp.ne.s32.totalorder %s262, %s263
      %p277 = scmp.eq.s32.totalorder %s25, 1
      %p278 = por %p276, %p277
      %p280 = scmp.ne.s32.totalorder %s263, %s279
      %p281 = scmp.eq.s32.totalorder %s25, 0
      %p282 = por %p280, %p281
      %s283 = ssub.s32 %s19, %s26
      %p284 = scmp.eq.s32.totalorder %s283, 0
      %s286 = sadd.s32 %s285, 1
      %s287 = scalar_select %p284, %s285, %s286
      %p290 = pneg %p284
      %p291 = scmp.eq.s32.totalorder %s19, 1
      %p292 = por %p290, %p291
      %p293 = scmp.ne.s32.totalorder %s285, %s288
      %p294 = scmp.eq.s32.totalorder %s19, 0
      %p295 = por %p293, %p294
      %p296 = scmp.ne.s32.totalorder %s285, %s288
      %p297 = scmp.eq.s32.totalorder %s24, 1
      %p298 = por %p296, %p297
      %p299 = scmp.ne.s32.totalorder %s288, %s289
      %p300 = scmp.eq.s32.totalorder %s24, 0
      %p301 = por %p299, %p300
      %p302 = scmp.ne.s32.totalorder %s288, %s289
      %p303 = scmp.eq.s32.totalorder %s25, 1
      %p304 = por %p302, %p303
      %p306 = scmp.ne.s32.totalorder %s289, %s305
      %p307 = scmp.eq.s32.totalorder %s25, 0
      %p308 = por %p306, %p307
      %s310 = sadd.s32 %s309, 1
      %p313 = scmp.eq.s32.totalorder %s19, 1
      %p314 = scmp.ne.s32.totalorder %s309, %s311
      %p315 = scmp.eq.s32.totalorder %s19, 0
      %p316 = por %p314, %p315
      %p317 = scmp.ne.s32.totalorder %s309, %s311
      %p318 = scmp.eq.s32.totalorder %s24, 1
      %p319 = por %p317, %p318
      %p320 = scmp.ne.s32.totalorder %s311, %s312
      %p321 = scmp.eq.s32.totalorder %s24, 0
      %p322 = por %p320, %p321
      %p323 = scmp.ne.s32.totalorder %s311, %s312
      %p324 = scmp.eq.s32.totalorder %s25, 1
      %p325 = por %p323, %p324
      %p327 = scmp.ne.s32.totalorder %s312, %s326
      %p328 = scmp.eq.s32.totalorder %s25, 0
      %p329 = por %p327, %p328
      %p330 = scmp.le.s32.totalorder 1, %s19
      %p331 = scmp.lt.s32.totalorder %s19, 3
      %p332 = pnand %p330, %p331
      %p333 = pneg %p332
      // Predicated region
      $region9: #{multiscale_loss.1} parent=5 // pred_check
        _
      $region10: #{multiscale_loss.1} parent=5 // pred_check_branch
        %335 = sbr.rel (%p332) target = $region12
      $region11: #{multiscale_loss.1} parent=5 // pred_region
        %s336 = ssub.s32 %s19, 1
        // Predicated region
        $region13: #{multiscale_loss.1} parent=11 // pred_check
          %p337 = pneg %p66
        $region14: #{multiscale_loss.1} parent=11 // pred_check_branch
          %339 = sbr.rel (%p337) target = $region16
        $region15: #{multiscale_loss.1} parent=11 // pred_region
          _
        $region16: #{multiscale_loss.1} parent=11 // pred_fallthru
          _
        // Predicated region
        $region17: #{multiscale_loss.1} parent=11 // pred_check
          %p340 = pneg %p87
        $region18: #{multiscale_loss.1} parent=11 // pred_check_branch
          %342 = sbr.rel (%p340) target = $region20
        $region19: #{multiscale_loss.1} parent=11 // pred_region
          _
        $region20: #{multiscale_loss.1} parent=11 // pred_fallthru
          _
        // Predicated region
        $region21: #{multiscale_loss.1} parent=11 // pred_check
          %p343 = pneg %p108
        $region22: #{multiscale_loss.1} parent=11 // pred_check_branch
          %345 = sbr.rel (%p343) target = $region24
        $region23: #{multiscale_loss.1} parent=11 // pred_region
          _
        $region24: #{multiscale_loss.1} parent=11 // pred_fallthru
          _
        // Predicated region
        $region25: #{multiscale_loss.1} parent=11 // pred_check
          %p346 = pneg %p129
        $region26: #{multiscale_loss.1} parent=11 // pred_check_branch
          %348 = sbr.rel (%p346) target = $region28
        $region27: #{multiscale_loss.1} parent=11 // pred_region
          _
        $region28: #{multiscale_loss.1} parent=11 // pred_fallthru
          _
        // Predicated region
        $region29: #{multiscale_loss.1} parent=11 // pred_check
          %p349 = pneg %p150
        $region30: #{multiscale_loss.1} parent=11 // pred_check_branch
          %351 = sbr.rel (%p349) target = $region32
        $region31: #{multiscale_loss.1} parent=11 // pred_region
          _
        $region32: #{multiscale_loss.1} parent=11 // pred_fallthru
          _
        // Predicated region
        $region33: #{multiscale_loss.1} parent=11 // pred_check
          %p352 = pneg %p171
        $region34: #{multiscale_loss.1} parent=11 // pred_check_branch
          %354 = sbr.rel (%p352) target = $region36
        $region35: #{multiscale_loss.1} parent=11 // pred_region
          _
        $region36: #{multiscale_loss.1} parent=11 // pred_fallthru
          _
      $region12: #{multiscale_loss.1} parent=5 // pred_fallthru
        _
      %p355 = scmp.lt.s32.totalorder %s19, 2
      // Predicated region
      $region37: #{multiscale_loss.1} parent=5 // pred_check
        %p356 = pneg %p355
      $region38: #{multiscale_loss.1} parent=5 // pred_check_branch
        %358 = sbr.rel (%p356) target = $region40
      $region39: #{multiscale_loss.1} parent=5 // pred_region
        // Predicated region
        $region41: #{multiscale_loss.1} parent=39 // pred_check
          %p359 = pneg %p39
        $region42: #{multiscale_loss.1} parent=39 // pred_check_branch
          %361 = sbr.rel (%p359) target = $region44
        $region43: #{multiscale_loss.1} parent=39 // pred_region
          %p362 = scmp.lt.s32.totalorder %s19, 1
          %s363 = scalar_select %p362, %s19, 1
          %s364 = smul.addr %s363, 4
          %s365 = smul.addr %s364, 8
          %s366 = scalar_lea.vmem %s0, %s365
        $region44: #{multiscale_loss.1} parent=39 // pred_fallthru
          _
        // Predicated region
        $region45: #{multiscale_loss.1} parent=39 // pred_check
          %p367 = pneg %p191
        $region46: #{multiscale_loss.1} parent=39 // pred_check_branch
          %369 = sbr.rel (%p367) target = $region48
        $region47: #{multiscale_loss.1} parent=39 // pred_region
          %p370 = scmp.lt.s32.totalorder %s19, 1
          %s371 = scalar_select %p370, %s19, 1
          %s372 = smul.addr %s371, 4
          %s373 = smul.addr %s372, 8
          %s374 = scalar_lea.vmem %s7, %s373
        $region48: #{multiscale_loss.1} parent=39 // pred_fallthru
          _
        // Predicated region
        $region49: #{multiscale_loss.1} parent=39 // pred_check
          %p375 = pneg %p217
        $region50: #{multiscale_loss.1} parent=39 // pred_check_branch
          %377 = sbr.rel (%p375) target = $region52
        $region51: #{multiscale_loss.1} parent=39 // pred_region
          %p378 = scmp.lt.s32.totalorder %s19, 1
          %s379 = scalar_select %p378, %s19, 1
          %s380 = smul.addr %s379, 2
          %s381 = smul.addr %s380, 8
          %s382 = scalar_lea.vmem %s8, %s381
        $region52: #{multiscale_loss.1} parent=39 // pred_fallthru
          _
        // Predicated region
        $region53: #{multiscale_loss.1} parent=39 // pred_check
          %p383 = pneg %p243
        $region54: #{multiscale_loss.1} parent=39 // pred_check_branch
          %385 = sbr.rel (%p383) target = $region56
        $region55: #{multiscale_loss.1} parent=39 // pred_region
          %p386 = scmp.lt.s32.totalorder %s19, 1
          %s387 = scalar_select %p386, %s19, 1
          %s388 = smul.addr %s387, 2
          %s389 = smul.addr %s388, 8
          %s390 = scalar_lea.vmem %s9, %s389
        $region56: #{multiscale_loss.1} parent=39 // pred_fallthru
          _
        // Predicated region
        $region57: #{multiscale_loss.1} parent=39 // pred_check
          %p391 = pneg %p269
        $region58: #{multiscale_loss.1} parent=39 // pred_check_branch
          %393 = sbr.rel (%p391) target = $region60
        $region59: #{multiscale_loss.1} parent=39 // pred_region
          %p394 = scmp.lt.s32.totalorder %s19, 1
          %s395 = scalar_select %p394, %s19, 1
          %s396 = smul.addr %s395, 2
          %s397 = smul.addr %s396, 8
          %s398 = scalar_lea.vmem %s10, %s397
        $region60: #{multiscale_loss.1} parent=39 // pred_fallthru
          _
        // Predicated region
        $region61: #{multiscale_loss.1} parent=39 // pred_check
          %p399 = pneg %p295
        $region62: #{multiscale_loss.1} parent=39 // pred_check_branch
          %401 = sbr.rel (%p399) target = $region64
        $region63: #{multiscale_loss.1} parent=39 // pred_region
          %p402 = scmp.lt.s32.totalorder %s19, 1
          %s403 = scalar_select %p402, %s19, 1
          %s404 = smul.addr %s403, 2
          %s405 = smul.addr %s404, 8
          %s406 = scalar_lea.vmem %s11, %s405
        $region64: #{multiscale_loss.1} parent=39 // pred_fallthru
          _
      $region40: #{multiscale_loss.1} parent=5 // pred_fallthru
        _
      %p407 = scmp.le.s32.totalorder 1, %s19
      %p408 = scmp.lt.s32.totalorder %s19, 3
      %p409 = pnand %p407, %p408
      %p410 = pneg %p409
      // Predicated region
      $region65: #{multiscale_loss.1} parent=5 // pred_check
        _
      $region66: #{multiscale_loss.1} parent=5 // pred_check_branch
        %412 = sbr.rel (%p409) target = $region68
      $region67: #{multiscale_loss.1} parent=5 // pred_region
        %s413 = ssub.s32 %s19, 1
        %p414 = scmp.lt.s32.totalorder %s24, 1
        %s415 = scalar_select %p414, %s24, 1
        %s416 = smul.addr %s415, 4
        %s417 = smul.addr %s416, 8
        %s418 = scalar_lea.vmem %s0, %s417
        %p419 = pneg %p45
        %p420 = pneg %p42
        %p421 = pneg %p66
        %p422 = pneg %p63
        %p423 = pneg %p87
        %p424 = pneg %p84
        %p425 = pneg %p108
        %p426 = pneg %p105
        %p427 = pneg %p129
        %p428 = pneg %p126
        %p429 = pneg %p150
        %p430 = pneg %p147
        %p431 = pneg %p171
        %p432 = pneg %p168
        %p433 = scmp.lt.s32.totalorder %s24, 1
        %s434 = scalar_select %p433, %s24, 1
        %s435 = smul.addr %s434, 4
        %s436 = smul.addr %s435, 8
        %s437 = scalar_lea.vmem %s7, %s436
        %p438 = pneg %p197
        %p439 = pneg %p194
        %p440 = scmp.lt.s32.totalorder %s24, 1
        %s441 = scalar_select %p440, %s24, 1
        %s442 = smul.addr %s441, 2
        %s443 = smul.addr %s442, 8
        %s444 = scalar_lea.vmem %s8, %s443
        %p445 = pneg %p223
        %p446 = pneg %p220
        %p447 = scmp.lt.s32.totalorder %s24, 1
        %s448 = scalar_select %p447, %s24, 1
        %s449 = smul.addr %s448, 2
        %s450 = smul.addr %s449, 8
        %s451 = scalar_lea.vmem %s9, %s450
        %p452 = pneg %p249
        %p453 = pneg %p246
        %p454 = scmp.lt.s32.totalorder %s24, 1
        %s455 = scalar_select %p454, %s24, 1
        %s456 = smul.addr %s455, 2
        %s457 = smul.addr %s456, 8
        %s458 = scalar_lea.vmem %s10, %s457
        %p459 = pneg %p275
        %p460 = pneg %p272
        %p461 = scmp.lt.s32.totalorder %s24, 1
        %s462 = scalar_select %p461, %s24, 1
        %s463 = smul.addr %s462, 2
        %s464 = smul.addr %s463, 8
        %s465 = scalar_lea.vmem %s11, %s464
        %p466 = pneg %p301
        %p467 = pneg %p298
        %p468 = pneg %p322
        %p469 = pneg %p319
        %p470 = scmp.lt.s32.totalorder %s24, 1
        %s471 = scalar_select %p470, %s24, 1
        %s472 = smul.addr %s471, 4
        %s473 = smul.addr %s472, 8
        %s474 = scalar_lea.vmem %s0, %s473
        %p475 = scmp.lt.s32.totalorder %s24, 1
        %s476 = scalar_select %p475, %s24, 1
        %s477 = smul.addr %s476, 4
        %s478 = smul.addr %s477, 8
        %s479 = scalar_lea.vmem %s7, %s478
        %p480 = scmp.lt.s32.totalorder %s24, 1
        %s481 = scalar_select %p480, %s24, 1
        %s482 = smul.addr %s481, 2
        %s483 = smul.addr %s482, 8
        %s484 = scalar_lea.vmem %s8, %s483
        %p485 = scmp.lt.s32.totalorder %s24, 1
        %s486 = scalar_select %p485, %s24, 1
        %s487 = smul.addr %s486, 2
        %s488 = smul.addr %s487, 8
        %s489 = scalar_lea.vmem %s9, %s488
        %p490 = scmp.lt.s32.totalorder %s24, 1
        %s491 = scalar_select %p490, %s24, 1
        %s492 = smul.addr %s491, 2
        %s493 = smul.addr %s492, 8
        %s494 = scalar_lea.vmem %s10, %s493
        %p495 = scmp.lt.s32.totalorder %s24, 1
        %s496 = scalar_select %p495, %s24, 1
        %s497 = smul.addr %s496, 2
        %s498 = smul.addr %s497, 8
        %s499 = scalar_lea.vmem %s11, %s498
        %p500 = scmp.eq.s32.totalorder %s24, 0
        // Predicated region
        $region69: #{multiscale_loss.1} parent=67 // pred_check
          %p501 = pneg %p500
        $region70: #{multiscale_loss.1} parent=67 // pred_check_branch
          %503 = sbr.rel (%p501) target = $region72
        $region71: #{multiscale_loss.1} parent=67 // pred_region
          %vm504 = vcmask 0
          %505 = vst.msk [vmem:[#allocation2] sm:$0x1] %vm504, 0.0
        $region72: #{multiscale_loss.1} parent=67 // pred_fallthru
          _
        %v506 = vld [vmem:[%s474] sm:$0xff]
        %v507 = vld [vmem:[%s474 + $0x8] sm:$0xff]
        %v508 = vld [vmem:[%s474 + $0x10] sm:$0xff]
        %v509 = vld [vmem:[%s474 + $0x18] sm:$0xff]
        %v510 = vld [vmem:[%s1] sm:$0xff]
        %v511 = vld [vmem:[%s1 + $0x8] sm:$0xff]
        %v512 = vld [vmem:[%s1 + $0x10] sm:$0xff]
        %v513 = vld [vmem:[%s1 + $0x18] sm:$0xff]
        %v514 = vld [vmem:[%s3] sm:$0xff]
        %v515 = vld [vmem:[%s3 + $0x8] sm:$0xff]
        %v516 = vld [vmem:[%s3 + $0x10] sm:$0xff]
        %v517 = vld [vmem:[%s3 + $0x18] sm:$0xff]
        %v518 = vld [vmem:[%s3 + $0x20] sm:$0xff]
        %v519 = vld [vmem:[%s3 + $0x28] sm:$0xff]
        %v520 = vld [vmem:[%s3 + $0x30] sm:$0xff]
        %v521 = vld [vmem:[%s3 + $0x38] sm:$0xff]
        %vm522 = vcmask 261120
        %v524 = vsel %vm522, %v510, 0
        %v527 = vsel %vm522, %v511, 0
        %v530 = vsel %vm522, %v512, 0
        %v533 = vsel %vm522, %v513, 0
        %535 = vmatprep.subr.mxu0 0.0
        %536 = vmatpush1.msra.mxu0 0.0
        %537 = vmatprep.subr.mxu0 0.0
        %538 = vmatpush1.msra.mxu0 0.0
        %539 = vmatprep.subr.mxu0 0.0
        %540 = vmatpush1.msra.mxu0 0.0
        %541 = vmatprep.subr.mxu0 0.0
        %542 = vmatpush1.msra.mxu0 0.0
        %543 = vmatprep.subr.mxu0 0.0
        %544 = vmatpush1.msra.mxu0 0.0
        %545 = vmatprep.subr.mxu0 0.0
        %546 = vmatpush1.msra.mxu0 0.0
        %547 = vmatprep.subr.mxu0 0.0
        %548 = vmatpush1.msra.mxu0 0.0
        %549 = vmatprep.subr.mxu0 0.0
        %550 = vmatpush1.msra.mxu0 0.0
        %551 = vmatprep.subr.mxu0 0.0
        %552 = vmatpush1.msra.mxu0 0.0
        %553 = vmatprep.subr.mxu0 0.0
        %554 = vmatpush1.msra.mxu0 0.0
        %555 = vmatprep.subr.mxu0 0.0
        %556 = vmatpush1.msra.mxu0 0.0
        %557 = vmatprep.subr.mxu0 0.0
        %558 = vmatpush1.msra.mxu0 0.0
        %559 = vmatprep.subr.mxu0 0.0
        %560 = vmatpush1.msra.mxu0 %v509
        %561 = vmatprep.subr.mxu0 0.0
        %562 = vmatpush1.msra.mxu0 %v508
        %563 = vmatprep.subr.mxu0 0.0
        %564 = vmatpush1.msra.mxu0 %v507
        %565 = vmatprep.subr.mxu0 0.0
        %566 = vmatpush1.msra.mxu0 %v506
        %567 = vmatprep.subr.mxu0 0.0
        %568 = vmatpush2.msra.mxu0 0.0
        %569 = vmatprep.subr.mxu0 0.0
        %570 = vmatpush2.msra.mxu0 0.0
        %571 = vmatprep.subr.mxu0 0.0
        %572 = vmatpush2.msra.mxu0 0.0
        %573 = vmatprep.subr.mxu0 0.0
        %574 = vmatpush2.msra.mxu0 0.0
        %575 = vmatprep.subr.mxu0 0.0
        %576 = vmatpush2.msra.mxu0 0.0
        %577 = vmatprep.subr.mxu0 0.0
        %578 = vmatpush2.msra.mxu0 0.0
        %579 = vmatprep.subr.mxu0 0.0
        %580 = vmatpush2.msra.mxu0 0.0
        %581 = vmatprep.subr.mxu0 0.0
        %582 = vmatpush2.msra.mxu0 0.0
        %583 = vmatprep.subr.mxu0 0.0
        %584 = vmatpush2.msra.mxu0 0.0
        %585 = vmatprep.subr.mxu0 0.0
        %586 = vmatpush2.msra.mxu0 0.0
        %587 = vmatprep.subr.mxu0 0.0
        %588 = vmatpush2.msra.mxu0 0.0
        %589 = vmatprep.subr.mxu0 0.0
        %590 = vmatpush2.msra.mxu0 0.0
        %591 = vmatprep.subr.mxu0 0.0
        %592 = vmatpush2.msra.mxu0 0.0
        %593 = vmatprep.subr.mxu0 0.0
        %594 = vmatpush2.msra.mxu0 0.0
        %595 = vmatprep.subr.mxu0 0.0
        %596 = vmatpush2.msra.mxu0 0.0
        %597 = vmatprep.subr.mxu0 0.0
        %598 = vmatpush2.msra.mxu0 0.0
        %599 = vmatprep.mubr.f32.mxu0 0.0
        %600 = vmatmul.mubr.f32.gmra.mxu0 %v524
        %v601 = vpop.f32.mrf.mxu0
        %v602 = vadd.f32 0.0, %v601
        %v603 = vpop.f32.mrf.mxu0
        %604 = vmatprep.mubr.f32.mxu0 0.0
        %605 = vmatmul.mubr.f32.gmra.mxu0 %v527
        %v606 = vpop.f32.mrf.mxu0
        %v607 = vadd.f32 0.0, %v606
        %v608 = vpop.f32.mrf.mxu0
        %609 = vmatprep.mubr.f32.mxu0 0.0
        %610 = vmatmul.mubr.f32.gmra.mxu0 %v530
        %v611 = vpop.f32.mrf.mxu0
        %v612 = vadd.f32 0.0, %v611
        %v613 = vpop.f32.mrf.mxu0
        %614 = vmatprep.mubr.f32.mxu0 0.0
        %615 = vmatmul.mubr.f32.gmra.mxu0 %v533
        %v616 = vpop.f32.mrf.mxu0
        %v617 = vadd.f32 0.0, %v616
        %v618 = vpop.f32.mrf.mxu0
        %619 = vdwg.mxu0
        %vm620 = vcmask 523264
        %v622 = vsel %vm620, %v602, 0
        %v625 = vsel %vm620, %v607, 0
        %v628 = vsel %vm620, %v612, 0
        %v631 = vsel %vm620, %v617, 0
        %v634 = vsel %vm620, %v514, 0
        %v637 = vsel %vm620, %v515, 0
        %v640 = vsel %vm620, %v516, 0
        %v643 = vsel %vm620, %v517, 0
        %v646 = vsel %vm620, %v518, 0
        %v649 = vsel %vm620, %v519, 0
        %v652 = vsel %vm620, %v520, 0
        %v655 = vsel %vm620, %v521, 0
        %657 = vmatprep.subr.mxu0 0.0
        %658 = vmatpush1.xpose.msra.mxu0 0.0
        %659 = vmatprep.subr.mxu0 0.0
        %660 = vmatpush1.xpose.msra.mxu0 0.0
        %661 = vmatprep.subr.mxu0 0.0
        %662 = vmatpush1.xpose.msra.mxu0 0.0
        %663 = vmatprep.subr.mxu0 0.0
        %664 = vmatpush1.xpose.msra.mxu0 0.0
        %665 = vmatprep.subr.mxu0 0.0
        %666 = vmatpush1.xpose.msra.mxu0 0.0
        %667 = vmatprep.subr.mxu0 0.0
        %668 = vmatpush1.xpose.msra.mxu0 0.0
        %669 = vmatprep.subr.mxu0 0.0
        %670 = vmatpush1.xpose.msra.mxu0 0.0
        %671 = vmatprep.subr.mxu0 0.0
        %672 = vmatpush1.xpose.msra.mxu0 0.0
        %673 = vmatprep.subr.mxu0 0.0
        %674 = vmatpush1.xpose.msra.mxu0 %v655
        %675 = vmatprep.subr.mxu0 0.0
        %676 = vmatpush1.xpose.msra.mxu0 %v652
        %677 = vmatprep.subr.mxu0 0.0
        %678 = vmatpush1.xpose.msra.mxu0 %v649
        %679 = vmatprep.subr.mxu0 0.0
        %680 = vmatpush1.xpose.msra.mxu0 %v646
        %681 = vmatprep.subr.mxu0 0.0
        %682 = vmatpush1.xpose.msra.mxu0 %v643
        %683 = vmatprep.subr.mxu0 0.0
        %684 = vmatpush1.xpose.msra.mxu0 %v640
        %685 = vmatprep.subr.mxu0 0.0
        %686 = vmatpush1.xpose.msra.mxu0 %v637
        %687 = vmatprep.subr.mxu0 0.0
        %688 = vmatpush1.xpose.msra.mxu0 %v634
        %689 = vmatprep.subr.mxu0 0.0
        %690 = vmatpush2.xpose.msra.mxu0 0.0
        %691 = vmatprep.subr.mxu0 0.0
        %692 = vmatpush2.xpose.msra.mxu0 0.0
        %693 = vmatprep.subr.mxu0 0.0
        %694 = vmatpush2.xpose.msra.mxu0 0.0
        %695 = vmatprep.subr.mxu0 0.0
        %696 = vmatpush2.xpose.msra.mxu0 0.0
        %697 = vmatprep.subr.mxu0 0.0
        %698 = vmatpush2.xpose.msra.mxu0 0.0
        %699 = vmatprep.subr.mxu0 0.0
        %700 = vmatpush2.xpose.msra.mxu0 0.0
        %701 = vmatprep.subr.mxu0 0.0
        %702 = vmatpush2.xpose.msra.mxu0 0.0
        %703 = vmatprep.subr.mxu0 0.0
        %704 = vmatpush2.xpose.msra.mxu0 0.0
        %705 = vmatprep.subr.mxu0 0.0
        %706 = vmatpush2.xpose.msra.mxu0 0.0
        %707 = vmatprep.subr.mxu0 0.0
        %708 = vmatpush2.xpose.msra.mxu0 0.0
        %709 = vmatprep.subr.mxu0 0.0
        %710 = vmatpush2.xpose.msra.mxu0 0.0
        %711 = vmatprep.subr.mxu0 0.0
        %712 = vmatpush2.xpose.msra.mxu0 0.0
        %713 = vmatprep.subr.mxu0 0.0
        %714 = vmatpush2.xpose.msra.mxu0 0.0
        %715 = vmatprep.subr.mxu0 0.0
        %716 = vmatpush2.xpose.msra.mxu0 0.0
        %717 = vmatprep.subr.mxu0 0.0
        %718 = vmatpush2.xpose.msra.mxu0 0.0
        %719 = vmatprep.subr.mxu0 0.0
        %720 = vmatpush2.xpose.msra.mxu0 0.0
        %721 = vmatprep.mubr.f32.mxu0 0.0
        %722 = vmatmul.mubr.f32.gmra.mxu0 %v622
        %v723 = vpop.f32.mrf.mxu0
        %v724 = vadd.f32 0.0, %v723
        %v725 = vpop.f32.mrf.mxu0
        %726 = vmatprep.mubr.f32.mxu0 0.0
        %727 = vmatmul.mubr.f32.gmra.mxu0 %v625
        %v728 = vpop.f32.mrf.mxu0
        %v729 = vadd.f32 0.0, %v728
        %v730 = vpop.f32.mrf.mxu0
        %731 = vmatprep.mubr.f32.mxu0 0.0
        %732 = vmatmul.mubr.f32.gmra.mxu0 %v628
        %v733 = vpop.f32.mrf.mxu0
        %v734 = vadd.f32 0.0, %v733
        %v735 = vpop.f32.mrf.mxu0
        %736 = vmatprep.mubr.f32.mxu0 0.0
        %737 = vmatmul.mubr.f32.gmra.mxu0 %v631
        %v738 = vpop.f32.mrf.mxu0
        %v739 = vadd.f32 0.0, %v738
        %v740 = vpop.f32.mrf.mxu0
        %741 = vdwg.mxu0
        %v742 = vlaneseq
        %v743 = vshrl.u32 %v742, 7
        %v744 = vadd.s32 %v743, 8
        %v745 = vadd.s32 %v743, 16
        %v746 = vadd.s32 %v743, 24
        %v747 = vlaneseq
        %v748 = vand.u32 %v747, 127
        %vm749 = vcmp.ge.s32.totalorder %v743, 3
        %vm750 = vcmp.ge.s32.totalorder %v744, 3
        %vm751 = vcmp.ge.s32.totalorder %v745, 3
        %vm752 = vcmp.ge.s32.totalorder %v746, 3
        %vm753 = vcmp.lt.s32.totalorder %v743, 29
        %vm754 = vcmp.lt.s32.totalorder %v744, 29
        %vm755 = vcmp.lt.s32.totalorder %v745, 29
        %vm756 = vcmp.lt.s32.totalorder %v746, 29
        %vm757 = vmand %vm749, %vm753
        %vm758 = vmand %vm750, %vm754
        %vm759 = vmand %vm751, %vm755
        %vm760 = vmand %vm752, %vm756
        %vm761 = vcmp.ge.s32.totalorder %v748, 3
        %vm762 = vmand %vm757, %vm761
        %vm763 = vmand %vm758, %vm761
        %vm764 = vmand %vm759, %vm761
        %vm765 = vmand %vm760, %vm761
        %vm766 = vcmp.lt.s32.totalorder %v748, 29
        %vm767 = vmand %vm762, %vm766
        %vm768 = vmand %vm763, %vm766
        %vm769 = vmand %vm764, %vm766
        %vm770 = vmand %vm765, %vm766
        %v771 = vld [vmem:[%s479] sm:$0xff]
        %v772 = vld [vmem:[%s479 + $0x8] sm:$0xff]
        %v773 = vld [vmem:[%s479 + $0x10] sm:$0xff]
        %v774 = vld [vmem:[%s479 + $0x18] sm:$0xff]
        %v775 = vsub.f32 %v724, %v771
        %v776 = vsub.f32 %v729, %v772
        %v777 = vsub.f32 %v734, %v773
        %v778 = vsub.f32 %v739, %v774
        %v779 = vmul.f32 %v775, %v775
        %v780 = vmul.f32 %v776, %v776
        %v781 = vmul.f32 %v777, %v777
        %v782 = vmul.f32 %v778, %v778
        %v783 = vld [vmem:[%s5] sm:$0xff]
        %v784 = vld [vmem:[%s5 + $0x8] sm:$0xff]
        %v785 = vld [vmem:[%s5 + $0x10] sm:$0xff]
        %v786 = vld [vmem:[%s5 + $0x18] sm:$0xff]
        %v787 = vld [vmem:[%s5 + $0x20] sm:$0xff]
        %v788 = vld [vmem:[%s5 + $0x28] sm:$0xff]
        %v789 = vld [vmem:[%s5 + $0x30] sm:$0xff]
        %v790 = vld [vmem:[%s5 + $0x38] sm:$0xff]
        %v792 = vsel %vm620, %v779, 0
        %v795 = vsel %vm620, %v780, 0
        %v798 = vsel %vm620, %v781, 0
        %v801 = vsel %vm620, %v782, 0
        %803 = vmatprep.subr.mxu0 0.0
        %804 = vmatpush1.msra.mxu0 0.0
        %805 = vmatprep.subr.mxu0 0.0
        %806 = vmatpush1.msra.mxu0 0.0
        %807 = vmatprep.subr.mxu0 0.0
        %808 = vmatpush1.msra.mxu0 0.0
        %809 = vmatprep.subr.mxu0 0.0
        %810 = vmatpush1.msra.mxu0 0.0
        %811 = vmatprep.subr.mxu0 0.0
        %812 = vmatpush1.msra.mxu0 0.0
        %813 = vmatprep.subr.mxu0 0.0
        %814 = vmatpush1.msra.mxu0 0.0
        %815 = vmatprep.subr.mxu0 0.0
        %816 = vmatpush1.msra.mxu0 0.0
        %817 = vmatprep.subr.mxu0 0.0
        %818 = vmatpush1.msra.mxu0 0.0
        %819 = vmatprep.subr.mxu0 0.0
        %820 = vmatpush1.msra.mxu0 %v790
        %821 = vmatprep.subr.mxu0 0.0
        %822 = vmatpush1.msra.mxu0 %v789
        %823 = vmatprep.subr.mxu0 0.0
        %824 = vmatpush1.msra.mxu0 %v788
        %825 = vmatprep.subr.mxu0 0.0
        %826 = vmatpush1.msra.mxu0 %v787
        %827 = vmatprep.subr.mxu0 0.0
        %828 = vmatpush1.msra.mxu0 %v786
        %829 = vmatprep.subr.mxu0 0.0
        %830 = vmatpush1.msra.mxu0 %v785
        %831 = vmatprep.subr.mxu0 0.0
        %832 = vmatpush1.msra.mxu0 %v784
        %833 = vmatprep.subr.mxu0 0.0
        %834 = vmatpush1.msra.mxu0 %v783
        %835 = vmatprep.subr.mxu0 0.0
        %836 = vmatpush2.msra.mxu0 0.0
        %837 = vmatprep.subr.mxu0 0.0
        %838 = vmatpush2.msra.mxu0 0.0
        %839 = vmatprep.subr.mxu0 0.0
        %840 = vmatpush2.msra.mxu0 0.0
        %841 = vmatprep.subr.mxu0 0.0
        %842 = vmatpush2.msra.mxu0 0.0
        %843 = vmatprep.subr.mxu0 0.0
        %844 = vmatpush2.msra.mxu0 0.0
        %845 = vmatprep.subr.mxu0 0.0
        %846 = vmatpush2.msra.mxu0 0.0
        %847 = vmatprep.subr.mxu0 0.0
        %848 = vmatpush2.msra.mxu0 0.0
        %849 = vmatprep.subr.mxu0 0.0
        %850 = vmatpush2.msra.mxu0 0.0
        %851 = vmatprep.subr.mxu0 0.0
        %852 = vmatpush2.msra.mxu0 0.0
        %853 = vmatprep.subr.mxu0 0.0
        %854 = vmatpush2.msra.mxu0 0.0
        %855 = vmatprep.subr.mxu0 0.0
        %856 = vmatpush2.msra.mxu0 0.0
        %857 = vmatprep.subr.mxu0 0.0
        %858 = vmatpush2.msra.mxu0 0.0
        %859 = vmatprep.subr.mxu0 0.0
        %860 = vmatpush2.msra.mxu0 0.0
        %861 = vmatprep.subr.mxu0 0.0
        %862 = vmatpush2.msra.mxu0 0.0
        %863 = vmatprep.subr.mxu0 0.0
        %864 = vmatpush2.msra.mxu0 0.0
        %865 = vmatprep.subr.mxu0 0.0
        %866 = vmatpush2.msra.mxu0 0.0
        %867 = vmatprep.mubr.f32.mxu0 0.0
        %868 = vmatmul.mubr.f32.gmra.mxu0 %v792
        %v869 = vpop.f32.mrf.mxu0
        %v870 = vadd.f32 0.0, %v869
        %v871 = vpop.f32.mrf.mxu0
        %872 = vmatprep.mubr.f32.mxu0 0.0
        %873 = vmatmul.mubr.f32.gmra.mxu0 %v795
        %v874 = vpop.f32.mrf.mxu0
        %v875 = vadd.f32 0.0, %v874
        %v876 = vpop.f32.mrf.mxu0
        %877 = vmatprep.mubr.f32.mxu0 0.0
        %878 = vmatmul.mubr.f32.gmra.mxu0 %v798
        %v879 = vpop.f32.mrf.mxu0
        %v880 = vadd.f32 0.0, %v879
        %v881 = vpop.f32.mrf.mxu0
        %882 = vmatprep.mubr.f32.mxu0 0.0
        %883 = vmatmul.mubr.f32.gmra.mxu0 %v801
        %v884 = vpop.f32.mrf.mxu0
        %v885 = vadd.f32 0.0, %v884
        %v886 = vpop.f32.mrf.mxu0
        %887 = vdwg.mxu0
        %v888 = vrsqrt.pop %v870
        %v889 = vmul.f32 %v870, %v888
        %vm890 = vcmp.eq.f32.partialorder %v870, inf
        %v891 = vsel %vm890, %v870, %v889
        %vm892 = vcmp.eq.f32.partialorder %v870, 0.0
        %v893 = vand.u32 %v870, 2147483648
        %v894 = vsel %vm892, %v893, %v891
        %v895 = vrsqrt.pop %v875
        %v896 = vmul.f32 %v875, %v895
        %vm897 = vcmp.eq.f32.partialorder %v875, inf
        %v898 = vsel %vm897, %v875, %v896
        %vm899 = vcmp.eq.f32.partialorder %v875, 0.0
        %v900 = vand.u32 %v875, 2147483648
        %v901 = vsel %vm899, %v900, %v898
        %v902 = vrsqrt.pop %v880
        %v903 = vmul.f32 %v880, %v902
        %vm904 = vcmp.eq.f32.partialorder %v880, inf
        %v905 = vsel %vm904, %v880, %v903
        %vm906 = vcmp.eq.f32.partialorder %v880, 0.0
        %v907 = vand.u32 %v880, 2147483648
        %v908 = vsel %vm906, %v907, %v905
        %v909 = vrsqrt.pop %v885
        %v910 = vmul.f32 %v885, %v909
        %vm911 = vcmp.eq.f32.partialorder %v885, inf
        %v912 = vsel %vm911, %v885, %v910
        %vm913 = vcmp.eq.f32.partialorder %v885, 0.0
        %v914 = vand.u32 %v885, 2147483648
        %v915 = vsel %vm913, %v914, %v912
        %v916 = vsel %vm767, %v894, 0.0
        %v917 = vsel %vm768, %v901, 0.0
        %v918 = vsel %vm769, %v908, 0.0
        %v919 = vsel %vm770, %v915, 0.0
        %v920 = vsel %vm522, %v916, 0.0
        %v921 = vsel %vm522, %v917, 0.0
        %v922 = vadd.f32 %v920, %v921
        %v923 = vsel %vm522, %v918, 0.0
        %v924 = vadd.f32 %v922, %v923
        %v925 = vsel %vm522, %v919, 0.0
        %v926 = vadd.f32 %v924, %v925
        %927 = vadd.xlane.f32.xlu0 %v926
        %v928 = vpop.xlane.xlu0 %927
        %v929 = vrot.slane %v928, 4
        %v930 = vadd.f32 %v928, %v929
        %v931 = vrot.slane %v930, 2
        %v932 = vadd.f32 %v930, %v931
        %v933 = vrot.slane %v932, 1
        %v934 = vadd.f32 %v932, %v933
        %s935 = vtos %v934
        %s936 = smul.f32 %s935, 0.005
        %s937 = sadd.f32 %s936, 0.0
        %v938 = vld [vmem:[%s2] sm:$0xff]
        %v939 = vld [vmem:[%s2 + $0x8] sm:$0xff]
        %v940 = vld [vmem:[%s4] sm:$0xff]
        %v941 = vld [vmem:[%s4 + $0x8] sm:$0xff]
        %v942 = vld [vmem:[%s4 + $0x10] sm:$0xff]
        %v943 = vld [vmem:[%s4 + $0x18] sm:$0xff]
        %v945 = vsel %vm522, %v938, 0
        %v948 = vsel %vm522, %v939, 0
        %950 = vmatprep.subr.mxu0 0.0
        %951 = vmatpush1.msra.mxu0 0.0
        %952 = vmatprep.subr.mxu0 0.0
        %953 = vmatpush1.msra.mxu0 0.0
        %954 = vmatprep.subr.mxu0 0.0
        %955 = vmatpush1.msra.mxu0 0.0
        %956 = vmatprep.subr.mxu0 0.0
        %957 = vmatpush1.msra.mxu0 0.0
        %958 = vmatprep.subr.mxu0 0.0
        %959 = vmatpush1.msra.mxu0 0.0
        %960 = vmatprep.subr.mxu0 0.0
        %961 = vmatpush1.msra.mxu0 0.0
        %962 = vmatprep.subr.mxu0 0.0
        %963 = vmatpush1.msra.mxu0 0.0
        %964 = vmatprep.subr.mxu0 0.0
        %965 = vmatpush1.msra.mxu0 0.0
        %966 = vmatprep.subr.mxu0 0.0
        %967 = vmatpush1.msra.mxu0 0.0
        %968 = vmatprep.subr.mxu0 0.0
        %969 = vmatpush1.msra.mxu0 0.0
        %970 = vmatprep.subr.mxu0 0.0
        %971 = vmatpush1.msra.mxu0 0.0
        %972 = vmatprep.subr.mxu0 0.0
        %973 = vmatpush1.msra.mxu0 0.0
        %974 = vmatprep.subr.mxu0 0.0
        %975 = vmatpush1.msra.mxu0 %v509
        %976 = vmatprep.subr.mxu0 0.0
        %977 = vmatpush1.msra.mxu0 %v508
        %978 = vmatprep.subr.mxu0 0.0
        %979 = vmatpush1.msra.mxu0 %v507
        %980 = vmatprep.subr.mxu0 0.0
        %981 = vmatpush1.msra.mxu0 %v506
        %982 = vmatprep.subr.mxu0 0.0
        %983 = vmatpush2.msra.mxu0 0.0
        %984 = vmatprep.subr.mxu0 0.0
        %985 = vmatpush2.msra.mxu0 0.0
        %986 = vmatprep.subr.mxu0 0.0
        %987 = vmatpush2.msra.mxu0 0.0
        %988 = vmatprep.subr.mxu0 0.0
        %989 = vmatpush2.msra.mxu0 0.0
        %990 = vmatprep.subr.mxu0 0.0
        %991 = vmatpush2.msra.mxu0 0.0
        %992 = vmatprep.subr.mxu0 0.0
        %993 = vmatpush2.msra.mxu0 0.0
        %994 = vmatprep.subr.mxu0 0.0
        %995 = vmatpush2.msra.mxu0 0.0
        %996 = vmatprep.subr.mxu0 0.0
        %997 = vmatpush2.msra.mxu0 0.0
        %998 = vmatprep.subr.mxu0 0.0
        %999 = vmatpush2.msra.mxu0 0.0
        %1000 = vmatprep.subr.mxu0 0.0
        %1001 = vmatpush2.msra.mxu0 0.0
        %1002 = vmatprep.subr.mxu0 0.0
        %1003 = vmatpush2.msra.mxu0 0.0
        %1004 = vmatprep.subr.mxu0 0.0
        %1005 = vmatpush2.msra.mxu0 0.0
        %1006 = vmatprep.subr.mxu0 0.0
        %1007 = vmatpush2.msra.mxu0 0.0
        %1008 = vmatprep.subr.mxu0 0.0
        %1009 = vmatpush2.msra.mxu0 0.0
        %1010 = vmatprep.subr.mxu0 0.0
        %1011 = vmatpush2.msra.mxu0 0.0
        %1012 = vmatprep.subr.mxu0 0.0
        %1013 = vmatpush2.msra.mxu0 0.0
        %1014 = vmatprep.mubr.f32.mxu0 0.0
        %1015 = vmatmul.mubr.f32.gmra.mxu0 %v945
        %v1016 = vpop.f32.mrf.mxu0
        %v1017 = vadd.f32 0.0, %v1016
        %v1018 = vpop.f32.mrf.mxu0
        %1019 = vmatprep.mubr.f32.mxu0 0.0
        %1020 = vmatmul.mubr.f32.gmra.mxu0 %v948
        %v1021 = vpop.f32.mrf.mxu0
        %v1022 = vadd.f32 0.0, %v1021
        %v1023 = vpop.f32.mrf.mxu0
        %1024 = vdwg.mxu0
        %v1026 = vsel %vm620, %v1017, 0
        %v1029 = vsel %vm620, %v1022, 0
        %v1032 = vsel %vm620, %v940, 0
        %v1035 = vsel %vm620, %v941, 0
        %v1038 = vsel %vm620, %v942, 0
        %v1041 = vsel %vm620, %v943, 0
        %1043 = vmatprep.subr.mxu0 0.0
        %1044 = vmatpush1.xpose.msra.mxu0 0.0
        %1045 = vmatprep.subr.mxu0 0.0
        %1046 = vmatpush1.xpose.msra.mxu0 0.0
        %1047 = vmatprep.subr.mxu0 0.0
        %1048 = vmatpush1.xpose.msra.mxu0 0.0
        %1049 = vmatprep.subr.mxu0 0.0
        %1050 = vmatpush1.xpose.msra.mxu0 0.0
        %1051 = vmatprep.subr.mxu0 0.0
        %1052 = vmatpush1.xpose.msra.mxu0 0.0
        %1053 = vmatprep.subr.mxu0 0.0
        %1054 = vmatpush1.xpose.msra.mxu0 0.0
        %1055 = vmatprep.subr.mxu0 0.0
        %1056 = vmatpush1.xpose.msra.mxu0 0.0
        %1057 = vmatprep.subr.mxu0 0.0
        %1058 = vmatpush1.xpose.msra.mxu0 0.0
        %1059 = vmatprep.subr.mxu0 0.0
        %1060 = vmatpush1.xpose.msra.mxu0 0.0
        %1061 = vmatprep.subr.mxu0 0.0
        %1062 = vmatpush1.xpose.msra.mxu0 0.0
        %1063 = vmatprep.subr.mxu0 0.0
        %1064 = vmatpush1.xpose.msra.mxu0 0.0
        %1065 = vmatprep.subr.mxu0 0.0
        %1066 = vmatpush1.xpose.msra.mxu0 0.0
        %1067 = vmatprep.subr.mxu0 0.0
        %1068 = vmatpush1.xpose.msra.mxu0 %v1041
        %1069 = vmatprep.subr.mxu0 0.0
        %1070 = vmatpush1.xpose.msra.mxu0 %v1038
        %1071 = vmatprep.subr.mxu0 0.0
        %1072 = vmatpush1.xpose.msra.mxu0 %v1035
        %1073 = vmatprep.subr.mxu0 0.0
        %1074 = vmatpush1.xpose.msra.mxu0 %v1032
        %1075 = vmatprep.subr.mxu0 0.0
        %1076 = vmatpush2.xpose.msra.mxu0 0.0
        %1077 = vmatprep.subr.mxu0 0.0
        %1078 = vmatpush2.xpose.msra.mxu0 0.0
        %1079 = vmatprep.subr.mxu0 0.0
        %1080 = vmatpush2.xpose.msra.mxu0 0.0
        %1081 = vmatprep.subr.mxu0 0.0
        %1082 = vmatpush2.xpose.msra.mxu0 0.0
        %1083 = vmatprep.subr.mxu0 0.0
        %1084 = vmatpush2.xpose.msra.mxu0 0.0
        %1085 = vmatprep.subr.mxu0 0.0
        %1086 = vmatpush2.xpose.msra.mxu0 0.0
        %1087 = vmatprep.subr.mxu0 0.0
        %1088 = vmatpush2.xpose.msra.mxu0 0.0
        %1089 = vmatprep.subr.mxu0 0.0
        %1090 = vmatpush2.xpose.msra.mxu0 0.0
        %1091 = vmatprep.subr.mxu0 0.0
        %1092 = vmatpush2.xpose.msra.mxu0 0.0
        %1093 = vmatprep.subr.mxu0 0.0
        %1094 = vmatpush2.xpose.msra.mxu0 0.0
        %1095 = vmatprep.subr.mxu0 0.0
        %1096 = vmatpush2.xpose.msra.mxu0 0.0
        %1097 = vmatprep.subr.mxu0 0.0
        %1098 = vmatpush2.xpose.msra.mxu0 0.0
        %1099 = vmatprep.subr.mxu0 0.0
        %1100 = vmatpush2.xpose.msra.mxu0 0.0
        %1101 = vmatprep.subr.mxu0 0.0
        %1102 = vmatpush2.xpose.msra.mxu0 0.0
        %1103 = vmatprep.subr.mxu0 0.0
        %1104 = vmatpush2.xpose.msra.mxu0 0.0
        %1105 = vmatprep.subr.mxu0 0.0
        %1106 = vmatpush2.xpose.msra.mxu0 0.0
        %1107 = vmatprep.mubr.f32.mxu0 0.0
        %1108 = vmatmul.mubr.f32.gmra.mxu0 %v1026
        %v1109 = vpop.f32.mrf.mxu0
        %v1110 = vadd.f32 0.0, %v1109
        %v1111 = vpop.f32.mrf.mxu0
        %1112 = vmatprep.mubr.f32.mxu0 0.0
        %1113 = vmatmul.mubr.f32.gmra.mxu0 %v1029
        %v1114 = vpop.f32.mrf.mxu0
        %v1115 = vadd.f32 0.0, %v1114
        %v1116 = vpop.f32.mrf.mxu0
        %1117 = vdwg.mxu0
        %vm1118 = vcmp.ge.s32.totalorder %v743, 1
        %vm1119 = vcmp.ge.s32.totalorder %v744, 1
        %vm1120 = vcmp.lt.s32.totalorder %v743, 15
        %vm1121 = vcmp.lt.s32.totalorder %v744, 15
        %vm1122 = vmand %vm1118, %vm1120
        %vm1123 = vmand %vm1119, %vm1121
        %vm1124 = vcmp.ge.s32.totalorder %v748, 1
        %vm1125 = vmand %vm1122, %vm1124
        %vm1126 = vmand %vm1123, %vm1124
        %vm1127 = vcmp.lt.s32.totalorder %v748, 15
        %vm1128 = vmand %vm1125, %vm1127
        %vm1129 = vmand %vm1126, %vm1127
        %v1130 = vld [vmem:[%s484] sm:$0xff]
        %v1131 = vld [vmem:[%s484 + $0x8] sm:$0xff]
        %v1132 = vsub.f32 %v1110, %v1130
        %v1133 = vsub.f32 %v1115, %v1131
        %v1134 = vmul.f32 %v1132, %v1132
        %v1135 = vmul.f32 %v1133, %v1133
        %v1136 = vld [vmem:[%s6] sm:$0xff]
        %v1137 = vld [vmem:[%s6 + $0x8] sm:$0xff]
        %v1138 = vld [vmem:[%s6 + $0x10] sm:$0xff]
        %v1139 = vld [vmem:[%s6 + $0x18] sm:$0xff]
        %v1141 = vsel %vm522, %v1134, 0
        %v1144 = vsel %vm522, %v1135, 0
        %1146 = vmatprep.subr.mxu0 0.0
        %1147 = vmatpush1.msra.mxu0 0.0
        %1148 = vmatprep.subr.mxu0 0.0
        %1149 = vmatpush1.msra.mxu0 0.0
        %1150 = vmatprep.subr.mxu0 0.0
        %1151 = vmatpush1.msra.mxu0 0.0
        %1152 = vmatprep.subr.mxu0 0.0
        %1153 = vmatpush1.msra.mxu0 0.0
        %1154 = vmatprep.subr.mxu0 0.0
        %1155 = vmatpush1.msra.mxu0 0.0
        %1156 = vmatprep.subr.mxu0 0.0
        %1157 = vmatpush1.msra.mxu0 0.0
        %1158 = vmatprep.subr.mxu0 0.0
        %1159 = vmatpush1.msra.mxu0 0.0
        %1160 = vmatprep.subr.mxu0 0.0
        %1161 = vmatpush1.msra.mxu0 0.0
        %1162 = vmatprep.subr.mxu0 0.0
        %1163 = vmatpush1.msra.mxu0 0.0
        %1164 = vmatprep.subr.mxu0 0.0
        %1165 = vmatpush1.msra.mxu0 0.0
        %1166 = vmatprep.subr.mxu0 0.0
        %1167 = vmatpush1.msra.mxu0 0.0
        %1168 = vmatprep.subr.mxu0 0.0
        %1169 = vmatpush1.msra.mxu0 0.0
        %1170 = vmatprep.subr.mxu0 0.0
        %1171 = vmatpush1.msra.mxu0 %v1139
        %1172 = vmatprep.subr.mxu0 0.0
        %1173 = vmatpush1.msra.mxu0 %v1138
        %1174 = vmatprep.subr.mxu0 0.0
        %1175 = vmatpush1.msra.mxu0 %v1137
        %1176 = vmatprep.subr.mxu0 0.0
        %1177 = vmatpush1.msra.mxu0 %v1136
        %1178 = vmatprep.subr.mxu0 0.0
        %1179 = vmatpush2.msra.mxu0 0.0
        %1180 = vmatprep.subr.mxu0 0.0
        %1181 = vmatpush2.msra.mxu0 0.0
        %1182 = vmatprep.subr.mxu0 0.0
        %1183 = vmatpush2.msra.mxu0 0.0
        %1184 = vmatprep.subr.mxu0 0.0
        %1185 = vmatpush2.msra.mxu0 0.0
        %1186 = vmatprep.subr.mxu0 0.0
        %1187 = vmatpush2.msra.mxu0 0.0
        %1188 = vmatprep.subr.mxu0 0.0
        %1189 = vmatpush2.msra.mxu0 0.0
        %1190 = vmatprep.subr.mxu0 0.0
        %1191 = vmatpush2.msra.mxu0 0.0
        %1192 = vmatprep.subr.mxu0 0.0
        %1193 = vmatpush2.msra.mxu0 0.0
        %1194 = vmatprep.subr.mxu0 0.0
        %1195 = vmatpush2.msra.mxu0 0.0
        %1196 = vmatprep.subr.mxu0 0.0
        %1197 = vmatpush2.msra.mxu0 0.0
        %1198 = vmatprep.subr.mxu0 0.0
        %1199 = vmatpush2.msra.mxu0 0.0
        %1200 = vmatprep.subr.mxu0 0.0
        %1201 = vmatpush2.msra.mxu0 0.0
        %1202 = vmatprep.subr.mxu0 0.0
        %1203 = vmatpush2.msra.mxu0 0.0
        %1204 = vmatprep.subr.mxu0 0.0
        %1205 = vmatpush2.msra.mxu0 0.0
        %1206 = vmatprep.subr.mxu0 0.0
        %1207 = vmatpush2.msra.mxu0 0.0
        %1208 = vmatprep.subr.mxu0 0.0
        %1209 = vmatpush2.msra.mxu0 0.0
        %1210 = vmatprep.mubr.f32.mxu0 0.0
        %1211 = vmatmul.mubr.f32.gmra.mxu0 %v1141
        %v1212 = vpop.f32.mrf.mxu0
        %v1213 = vadd.f32 0.0, %v1212
        %v1214 = vpop.f32.mrf.mxu0
        %1215 = vmatprep.mubr.f32.mxu0 0.0
        %1216 = vmatmul.mubr.f32.gmra.mxu0 %v1144
        %v1217 = vpop.f32.mrf.mxu0
        %v1218 = vadd.f32 0.0, %v1217
        %v1219 = vpop.f32.mrf.mxu0
        %1220 = vdwg.mxu0
        %v1221 = vrsqrt.pop %v1213
        %v1222 = vmul.f32 %v1213, %v1221
        %vm1223 = vcmp.eq.f32.partialorder %v1213, inf
        %v1224 = vsel %vm1223, %v1213, %v1222
        %vm1225 = vcmp.eq.f32.partialorder %v1213, 0.0
        %v1226 = vand.u32 %v1213, 2147483648
        %v1227 = vsel %vm1225, %v1226, %v1224
        %v1228 = vrsqrt.pop %v1218
        %v1229 = vmul.f32 %v1218, %v1228
        %vm1230 = vcmp.eq.f32.partialorder %v1218, inf
        %v1231 = vsel %vm1230, %v1218, %v1229
        %vm1232 = vcmp.eq.f32.partialorder %v1218, 0.0
        %v1233 = vand.u32 %v1218, 2147483648
        %v1234 = vsel %vm1232, %v1233, %v1231
        %v1235 = vsel %vm1128, %v1227, 0.0
        %v1236 = vsel %vm1129, %v1234, 0.0
        %vm1237 = vcmask 130048
        %v1238 = vsel %vm1237, %v1235, 0.0
        %v1239 = vsel %vm1237, %v1236, 0.0
        %v1240 = vadd.f32 %v1238, %v1239
        %1241 = vadd.xlane.f32.xlu0 %v1240
        %v1242 = vpop.xlane.xlu0 %1241
        %v1243 = vrot.slane %v1242, 4
        %v1244 = vadd.f32 %v1242, %v1243
        %v1245 = vrot.slane %v1244, 2
        %v1246 = vadd.f32 %v1244, %v1245
        %v1247 = vrot.slane %v1246, 1
        %v1248 = vadd.f32 %v1246, %v1247
        %s1249 = vtos %v1248
        %s1250 = smul.f32 %s1249, 0.01
        %s1251 = sadd.f32 %s937, %s1250
        %v1252 = vld [vmem:[%s489] sm:$0xff]
        %v1253 = vld [vmem:[%s489 + $0x8] sm:$0xff]
        %v1254 = vsub.f32 %v1110, %v1252
        %v1255 = vsub.f32 %v1115, %v1253
        %v1256 = vmul.f32 %v1254, %v1254
        %v1257 = vmul.f32 %v1255, %v1255
        %v1259 = vsel %vm522, %v1256, 0
        %v1262 = vsel %vm522, %v1257, 0
        %1264 = vmatprep.subr.mxu0 0.0
        %1265 = vmatpush1.msra.mxu0 0.0
        %1266 = vmatprep.subr.mxu0 0.0
        %1267 = vmatpush1.msra.mxu0 0.0
        %1268 = vmatprep.subr.mxu0 0.0
        %1269 = vmatpush1.msra.mxu0 0.0
        %1270 = vmatprep.subr.mxu0 0.0
        %1271 = vmatpush1.msra.mxu0 0.0
        %1272 = vmatprep.subr.mxu0 0.0
        %1273 = vmatpush1.msra.mxu0 0.0
        %1274 = vmatprep.subr.mxu0 0.0
        %1275 = vmatpush1.msra.mxu0 0.0
        %1276 = vmatprep.subr.mxu0 0.0
        %1277 = vmatpush1.msra.mxu0 0.0
        %1278 = vmatprep.subr.mxu0 0.0
        %1279 = vmatpush1.msra.mxu0 0.0
        %1280 = vmatprep.subr.mxu0 0.0
        %1281 = vmatpush1.msra.mxu0 0.0
        %1282 = vmatprep.subr.mxu0 0.0
        %1283 = vmatpush1.msra.mxu0 0.0
        %1284 = vmatprep.subr.mxu0 0.0
        %1285 = vmatpush1.msra.mxu0 0.0
        %1286 = vmatprep.subr.mxu0 0.0
        %1287 = vmatpush1.msra.mxu0 0.0
        %1288 = vmatprep.subr.mxu0 0.0
        %1289 = vmatpush1.msra.mxu0 %v1139
        %1290 = vmatprep.subr.mxu0 0.0
        %1291 = vmatpush1.msra.mxu0 %v1138
        %1292 = vmatprep.subr.mxu0 0.0
        %1293 = vmatpush1.msra.mxu0 %v1137
        %1294 = vmatprep.subr.mxu0 0.0
        %1295 = vmatpush1.msra.mxu0 %v1136
        %1296 = vmatprep.subr.mxu0 0.0
        %1297 = vmatpush2.msra.mxu0 0.0
        %1298 = vmatprep.subr.mxu0 0.0
        %1299 = vmatpush2.msra.mxu0 0.0
        %1300 = vmatprep.subr.mxu0 0.0
        %1301 = vmatpush2.msra.mxu0 0.0
        %1302 = vmatprep.subr.mxu0 0.0
        %1303 = vmatpush2.msra.mxu0 0.0
        %1304 = vmatprep.subr.mxu0 0.0
        %1305 = vmatpush2.msra.mxu0 0.0
        %1306 = vmatprep.subr.mxu0 0.0
        %1307 = vmatpush2.msra.mxu0 0.0
        %1308 = vmatprep.subr.mxu0 0.0
        %1309 = vmatpush2.msra.mxu0 0.0
        %1310 = vmatprep.subr.mxu0 0.0
        %1311 = vmatpush2.msra.mxu0 0.0
        %1312 = vmatprep.subr.mxu0 0.0
        %1313 = vmatpush2.msra.mxu0 0.0
        %1314 = vmatprep.subr.mxu0 0.0
        %1315 = vmatpush2.msra.mxu0 0.0
        %1316 = vmatprep.subr.mxu0 0.0
        %1317 = vmatpush2.msra.mxu0 0.0
        %1318 = vmatprep.subr.mxu0 0.0
        %1319 = vmatpush2.msra.mxu0 0.0
        %1320 = vmatprep.subr.mxu0 0.0
        %1321 = vmatpush2.msra.mxu0 0.0
        %1322 = vmatprep.subr.mxu0 0.0
        %1323 = vmatpush2.msra.mxu0 0.0
        %1324 = vmatprep.subr.mxu0 0.0
        %1325 = vmatpush2.msra.mxu0 0.0
        %1326 = vmatprep.subr.mxu0 0.0
        %1327 = vmatpush2.msra.mxu0 0.0
        %1328 = vmatprep.mubr.f32.mxu0 0.0
        %1329 = vmatmul.mubr.f32.gmra.mxu0 %v1259
        %v1330 = vpop.f32.mrf.mxu0
        %v1331 = vadd.f32 0.0, %v1330
        %v1332 = vpop.f32.mrf.mxu0
        %1333 = vmatprep.mubr.f32.mxu0 0.0
        %1334 = vmatmul.mubr.f32.gmra.mxu0 %v1262
        %v1335 = vpop.f32.mrf.mxu0
        %v1336 = vadd.f32 0.0, %v1335
        %v1337 = vpop.f32.mrf.mxu0
        %1338 = vdwg.mxu0
        %v1339 = vrsqrt.pop %v1331
        %v1340 = vmul.f32 %v1331, %v1339
        %vm1341 = vcmp.eq.f32.partialorder %v1331, inf
        %v1342 = vsel %vm1341, %v1331, %v1340
        %vm1343 = vcmp.eq.f32.partialorder %v1331, 0.0
        %v1344 = vand.u32 %v1331, 2147483648
        %v1345 = vsel %vm1343, %v1344, %v1342
        %v1346 = vrsqrt.pop %v1336
        %v1347 = vmul.f32 %v1336, %v1346
        %vm1348 = vcmp.eq.f32.partialorder %v1336, inf
        %v1349 = vsel %vm1348, %v1336, %v1347
        %vm1350 = vcmp.eq.f32.partialorder %v1336, 0.0
        %v1351 = vand.u32 %v1336, 2147483648
        %v1352 = vsel %vm1350, %v1351, %v1349
        %v1353 = vsel %vm1128, %v1345, 0.0
        %v1354 = vsel %vm1129, %v1352, 0.0
        %v1355 = vsel %vm1237, %v1353, 0.0
        %v1356 = vsel %vm1237, %v1354, 0.0
        %v1357 = vadd.f32 %v1355, %v1356
        %1358 = vadd.xlane.f32.xlu0 %v1357
        %v1359 = vpop.xlane.xlu0 %1358
        %v1360 = vrot.slane %v1359, 4
        %v1361 = vadd.f32 %v1359, %v1360
        %v1362 = vrot.slane %v1361, 2
        %v1363 = vadd.f32 %v1361, %v1362
        %v1364 = vrot.slane %v1363, 1
        %v1365 = vadd.f32 %v1363, %v1364
        %s1366 = vtos %v1365
        %s1367 = smul.f32 %s1366, 0.02
        %s1368 = sadd.f32 %s1251, %s1367
        %v1369 = vld [vmem:[%s494] sm:$0xff]
        %v1370 = vld [vmem:[%s494 + $0x8] sm:$0xff]
        %v1371 = vsub.f32 %v1110, %v1369
        %v1372 = vsub.f32 %v1115, %v1370
        %v1373 = vmul.f32 %v1371, %v1371
        %v1374 = vmul.f32 %v1372, %v1372
        %v1376 = vsel %vm522, %v1373, 0
        %v1379 = vsel %vm522, %v1374, 0
        %1381 = vmatprep.subr.mxu0 0.0
        %1382 = vmatpush1.msra.mxu0 0.0
        %1383 = vmatprep.subr.mxu0 0.0
        %1384 = vmatpush1.msra.mxu0 0.0
        %1385 = vmatprep.subr.mxu0 0.0
        %1386 = vmatpush1.msra.mxu0 0.0
        %1387 = vmatprep.subr.mxu0 0.0
        %1388 = vmatpush1.msra.mxu0 0.0
        %1389 = vmatprep.subr.mxu0 0.0
        %1390 = vmatpush1.msra.mxu0 0.0
        %1391 = vmatprep.subr.mxu0 0.0
        %1392 = vmatpush1.msra.mxu0 0.0
        %1393 = vmatprep.subr.mxu0 0.0
        %1394 = vmatpush1.msra.mxu0 0.0
        %1395 = vmatprep.subr.mxu0 0.0
        %1396 = vmatpush1.msra.mxu0 0.0
        %1397 = vmatprep.subr.mxu0 0.0
        %1398 = vmatpush1.msra.mxu0 0.0
        %1399 = vmatprep.subr.mxu0 0.0
        %1400 = vmatpush1.msra.mxu0 0.0
        %1401 = vmatprep.subr.mxu0 0.0
        %1402 = vmatpush1.msra.mxu0 0.0
        %1403 = vmatprep.subr.mxu0 0.0
        %1404 = vmatpush1.msra.mxu0 0.0
        %1405 = vmatprep.subr.mxu0 0.0
        %1406 = vmatpush1.msra.mxu0 %v1139
        %1407 = vmatprep.subr.mxu0 0.0
        %1408 = vmatpush1.msra.mxu0 %v1138
        %1409 = vmatprep.subr.mxu0 0.0
        %1410 = vmatpush1.msra.mxu0 %v1137
        %1411 = vmatprep.subr.mxu0 0.0
        %1412 = vmatpush1.msra.mxu0 %v1136
        %1413 = vmatprep.subr.mxu0 0.0
        %1414 = vmatpush2.msra.mxu0 0.0
        %1415 = vmatprep.subr.mxu0 0.0
        %1416 = vmatpush2.msra.mxu0 0.0
        %1417 = vmatprep.subr.mxu0 0.0
        %1418 = vmatpush2.msra.mxu0 0.0
        %1419 = vmatprep.subr.mxu0 0.0
        %1420 = vmatpush2.msra.mxu0 0.0
        %1421 = vmatprep.subr.mxu0 0.0
        %1422 = vmatpush2.msra.mxu0 0.0
        %1423 = vmatprep.subr.mxu0 0.0
        %1424 = vmatpush2.msra.mxu0 0.0
        %1425 = vmatprep.subr.mxu0 0.0
        %1426 = vmatpush2.msra.mxu0 0.0
        %1427 = vmatprep.subr.mxu0 0.0
        %1428 = vmatpush2.msra.mxu0 0.0
        %1429 = vmatprep.subr.mxu0 0.0
        %1430 = vmatpush2.msra.mxu0 0.0
        %1431 = vmatprep.subr.mxu0 0.0
        %1432 = vmatpush2.msra.mxu0 0.0
        %1433 = vmatprep.subr.mxu0 0.0
        %1434 = vmatpush2.msra.mxu0 0.0
        %1435 = vmatprep.subr.mxu0 0.0
        %1436 = vmatpush2.msra.mxu0 0.0
        %1437 = vmatprep.subr.mxu0 0.0
        %1438 = vmatpush2.msra.mxu0 0.0
        %1439 = vmatprep.subr.mxu0 0.0
        %1440 = vmatpush2.msra.mxu0 0.0
        %1441 = vmatprep.subr.mxu0 0.0
        %1442 = vmatpush2.msra.mxu0 0.0
        %1443 = vmatprep.subr.mxu0 0.0
        %1444 = vmatpush2.msra.mxu0 0.0
        %1445 = vmatprep.mubr.f32.mxu0 0.0
        %1446 = vmatmul.mubr.f32.gmra.mxu0 %v1376
        %v1447 = vpop.f32.mrf.mxu0
        %v1448 = vadd.f32 0.0, %v1447
        %v1449 = vpop.f32.mrf.mxu0
        %1450 = vmatprep.mubr.f32.mxu0 0.0
        %1451 = vmatmul.mubr.f32.gmra.mxu0 %v1379
        %v1452 = vpop.f32.mrf.mxu0
        %v1453 = vadd.f32 0.0, %v1452
        %v1454 = vpop.f32.mrf.mxu0
        %1455 = vdwg.mxu0
        %v1456 = vrsqrt.pop %v1448
        %v1457 = vmul.f32 %v1448, %v1456
        %vm1458 = vcmp.eq.f32.partialorder %v1448, inf
        %v1459 = vsel %vm1458, %v1448, %v1457
        %vm1460 = vcmp.eq.f32.partialorder %v1448, 0.0
        %v1461 = vand.u32 %v1448, 2147483648
        %v1462 = vsel %vm1460, %v1461, %v1459
        %v1463 = vrsqrt.pop %v1453
        %v1464 = vmul.f32 %v1453, %v1463
        %vm1465 = vcmp.eq.f32.partialorder %v1453, inf
        %v1466 = vsel %vm1465, %v1453, %v1464
        %vm1467 = vcmp.eq.f32.partialorder %v1453, 0.0
        %v1468 = vand.u32 %v1453, 2147483648
        %v1469 = vsel %vm1467, %v1468, %v1466
        %v1470 = vsel %vm1128, %v1462, 0.0
        %v1471 = vsel %vm1129, %v1469, 0.0
        %v1472 = vsel %vm1237, %v1470, 0.0
        %v1473 = vsel %vm1237, %v1471, 0.0
        %v1474 = vadd.f32 %v1472, %v1473
        %1475 = vadd.xlane.f32.xlu0 %v1474
        %v1476 = vpop.xlane.xlu0 %1475
        %v1477 = vrot.slane %v1476, 4
        %v1478 = vadd.f32 %v1476, %v1477
        %v1479 = vrot.slane %v1478, 2
        %v1480 = vadd.f32 %v1478, %v1479
        %v1481 = vrot.slane %v1480, 1
        %v1482 = vadd.f32 %v1480, %v1481
        %s1483 = vtos %v1482
        %s1484 = smul.f32 %s1483, 0.08
        %s1485 = sadd.f32 %s1368, %s1484
        %v1486 = vld [vmem:[%s499] sm:$0xff]
        %v1487 = vld [vmem:[%s499 + $0x8] sm:$0xff]
        %v1488 = vsub.f32 %v1110, %v1486
        %v1489 = vsub.f32 %v1115, %v1487
        %v1490 = vmul.f32 %v1488, %v1488
        %v1491 = vmul.f32 %v1489, %v1489
        %v1493 = vsel %vm522, %v1490, 0
        %v1496 = vsel %vm522, %v1491, 0
        %1498 = vmatprep.subr.mxu0 0.0
        %1499 = vmatpush1.msra.mxu0 0.0
        %1500 = vmatprep.subr.mxu0 0.0
        %1501 = vmatpush1.msra.mxu0 0.0
        %1502 = vmatprep.subr.mxu0 0.0
        %1503 = vmatpush1.msra.mxu0 0.0
        %1504 = vmatprep.subr.mxu0 0.0
        %1505 = vmatpush1.msra.mxu0 0.0
        %1506 = vmatprep.subr.mxu0 0.0
        %1507 = vmatpush1.msra.mxu0 0.0
        %1508 = vmatprep.subr.mxu0 0.0
        %1509 = vmatpush1.msra.mxu0 0.0
        %1510 = vmatprep.subr.mxu0 0.0
        %1511 = vmatpush1.msra.mxu0 0.0
        %1512 = vmatprep.subr.mxu0 0.0
        %1513 = vmatpush1.msra.mxu0 0.0
        %1514 = vmatprep.subr.mxu0 0.0
        %1515 = vmatpush1.msra.mxu0 0.0
        %1516 = vmatprep.subr.mxu0 0.0
        %1517 = vmatpush1.msra.mxu0 0.0
        %1518 = vmatprep.subr.mxu0 0.0
        %1519 = vmatpush1.msra.mxu0 0.0
        %1520 = vmatprep.subr.mxu0 0.0
        %1521 = vmatpush1.msra.mxu0 0.0
        %1522 = vmatprep.subr.mxu0 0.0
        %1523 = vmatpush1.msra.mxu0 %v1139
        %1524 = vmatprep.subr.mxu0 0.0
        %1525 = vmatpush1.msra.mxu0 %v1138
        %1526 = vmatprep.subr.mxu0 0.0
        %1527 = vmatpush1.msra.mxu0 %v1137
        %1528 = vmatprep.subr.mxu0 0.0
        %1529 = vmatpush1.msra.mxu0 %v1136
        %1530 = vmatprep.subr.mxu0 0.0
        %1531 = vmatpush2.msra.mxu0 0.0
        %1532 = vmatprep.subr.mxu0 0.0
        %1533 = vmatpush2.msra.mxu0 0.0
        %1534 = vmatprep.subr.mxu0 0.0
        %1535 = vmatpush2.msra.mxu0 0.0
        %1536 = vmatprep.subr.mxu0 0.0
        %1537 = vmatpush2.msra.mxu0 0.0
        %1538 = vmatprep.subr.mxu0 0.0
        %1539 = vmatpush2.msra.mxu0 0.0
        %1540 = vmatprep.subr.mxu0 0.0
        %1541 = vmatpush2.msra.mxu0 0.0
        %1542 = vmatprep.subr.mxu0 0.0
        %1543 = vmatpush2.msra.mxu0 0.0
        %1544 = vmatprep.subr.mxu0 0.0
        %1545 = vmatpush2.msra.mxu0 0.0
        %1546 = vmatprep.subr.mxu0 0.0
        %1547 = vmatpush2.msra.mxu0 0.0
        %1548 = vmatprep.subr.mxu0 0.0
        %1549 = vmatpush2.msra.mxu0 0.0
        %1550 = vmatprep.subr.mxu0 0.0
        %1551 = vmatpush2.msra.mxu0 0.0
        %1552 = vmatprep.subr.mxu0 0.0
        %1553 = vmatpush2.msra.mxu0 0.0
        %1554 = vmatprep.subr.mxu0 0.0
        %1555 = vmatpush2.msra.mxu0 0.0
        %1556 = vmatprep.subr.mxu0 0.0
        %1557 = vmatpush2.msra.mxu0 0.0
        %1558 = vmatprep.subr.mxu0 0.0
        %1559 = vmatpush2.msra.mxu0 0.0
        %1560 = vmatprep.subr.mxu0 0.0
        %1561 = vmatpush2.msra.mxu0 0.0
        %1562 = vmatprep.mubr.f32.mxu0 0.0
        %1563 = vmatmul.mubr.f32.gmra.mxu0 %v1493
        %v1564 = vpop.f32.mrf.mxu0
        %v1565 = vadd.f32 0.0, %v1564
        %v1566 = vpop.f32.mrf.mxu0
        %1567 = vmatprep.mubr.f32.mxu0 0.0
        %1568 = vmatmul.mubr.f32.gmra.mxu0 %v1496
        %v1569 = vpop.f32.mrf.mxu0
        %v1570 = vadd.f32 0.0, %v1569
        %v1571 = vpop.f32.mrf.mxu0
        %1572 = vdwg.mxu0
        %v1573 = vrsqrt.pop %v1565
        %v1574 = vmul.f32 %v1565, %v1573
        %vm1575 = vcmp.eq.f32.partialorder %v1565, inf
        %v1576 = vsel %vm1575, %v1565, %v1574
        %vm1577 = vcmp.eq.f32.partialorder %v1565, 0.0
        %v1578 = vand.u32 %v1565, 2147483648
        %v1579 = vsel %vm1577, %v1578, %v1576
        %v1580 = vrsqrt.pop %v1570
        %v1581 = vmul.f32 %v1570, %v1580
        %vm1582 = vcmp.eq.f32.partialorder %v1570, inf
        %v1583 = vsel %vm1582, %v1570, %v1581
        %vm1584 = vcmp.eq.f32.partialorder %v1570, 0.0
        %v1585 = vand.u32 %v1570, 2147483648
        %v1586 = vsel %vm1584, %v1585, %v1583
        %v1587 = vsel %vm1128, %v1579, 0.0
        %v1588 = vsel %vm1129, %v1586, 0.0
        %v1589 = vsel %vm1237, %v1587, 0.0
        %v1590 = vsel %vm1237, %v1588, 0.0
        %v1591 = vadd.f32 %v1589, %v1590
        %1592 = vadd.xlane.f32.xlu0 %v1591
        %v1593 = vpop.xlane.xlu0 %1592
        %v1594 = vrot.slane %v1593, 4
        %v1595 = vadd.f32 %v1593, %v1594
        %v1596 = vrot.slane %v1595, 2
        %v1597 = vadd.f32 %v1595, %v1596
        %v1598 = vrot.slane %v1597, 1
        %v1599 = vadd.f32 %v1597, %v1598
        %s1600 = vtos %v1599
        %s1601 = smul.f32 %s1600, 0.32
        %s1602 = sadd.f32 %s1485, %s1601
        %v1603 = vld [vmem:[#allocation2] sm:$0x1]
        %s1604 = smul.f32 %s1602, 0.5
        %v1605 = vstv %s1604
        %v1606 = vadd.f32 %v1603, %v1605
        %vm1607 = vcmask 0
        %1608 = vst.msk [vmem:[#allocation2] sm:$0x1] %vm1607, %v1606
        // Predicated region
        $region73: #{multiscale_loss.1} parent=67 // pred_check
          %p1609 = pneg %p319
        $region74: #{multiscale_loss.1} parent=67 // pred_check_branch
          %1611 = sbr.rel (%p1609) target = $region76
        $region75: #{multiscale_loss.1} parent=67 // pred_region
          %s1613 = ssub.s32 16, 16
          %1614 = vsyncadd [#allocation3], %s1613
          %s1616 = sshll.u32 [#allocation2], 4
          %s1617 = int_to_ptr.vmem [resolvable:$true] %s1616
          %1619 = dma.vmem_to_hbm [thread:$0]  %s1617, 16, %s12, [#allocation3]
        $region76: #{multiscale_loss.1} parent=67 // pred_fallthru
          _
        // Predicated region
        $region77: #{multiscale_loss.1} parent=67 // pred_check
          %p1620 = pneg %p319
        $region78: #{multiscale_loss.1} parent=67 // pred_check_branch
          %1622 = sbr.rel (%p1620) target = $region80
        $region79: #{multiscale_loss.1} parent=67 // pred_region
          %1623 = dma.done [#allocation3], 16
        $region80: #{multiscale_loss.1} parent=67 // pred_fallthru
          _
      $region68: #{multiscale_loss.1} parent=5 // pred_fallthru
        _
      %p1624 = scmp.le.s32.totalorder 2, %s19
      // Predicated region
      $region81: #{multiscale_loss.1} parent=5 // pred_check
        %p1625 = pneg %p1624
      $region82: #{multiscale_loss.1} parent=5 // pred_check_branch
        %1627 = sbr.rel (%p1625) target = $region84
      $region83: #{multiscale_loss.1} parent=5 // pred_region
        %s1628 = ssub.s32 %s19, 2
      $region84: #{multiscale_loss.1} parent=5 // pred_fallthru
        _
    $region6: #{multiscale_loss.1} parent=1 // loop_footer
      %s23 = sadd.s32 1, %s19
    $region7: #{multiscale_loss.1} parent=1 // loop_footer_branch
      %18 = sbr.rel target = $region3
    $region8: #{multiscale_loss.1} parent=1 // loop_exit
      _
    %1629 = vsyncpa [#allocation3], 1
    %s1630 = scalar_lea.sflag [#allocation3], 1
    %1631 = vsyncpa %s1630, 1

</llo_original>
